<compile_context>
chip_gen: v5e
topology: v5e:2x2
jax: 0.10.0
libtpu: 0.0.40
codegen_flags: <defaults>
</compile_context>

<pallas_src>
import jax
import jax.numpy as jnp
from jax import lax
from jax.experimental import pallas as pl
from jax.experimental.pallas import tpu as pltpu

KSIZE = 7
PAD = 3  # padding for kernel_size=7


def _choose_tiles(N, C, HW, dtype, block_budget_bytes=14 * 1024 * 1024):
    """Pick batch tile BT (divides N) and channel tile CT (divides C)."""
    elem_bytes = jnp.dtype(dtype).itemsize
    sub = max(8, 32 // max(elem_bytes, 1))  # sublane pack: 8 f32, 16 bf16, 32 i8

    # Batch tile: largest of (8, 4, 2) dividing N while keeping >= 2 batch grid
    # steps, so both v7x TensorCores get work; else 1.
    bt = 1
    for cand in (8, 4, 2):
        if N % cand == 0 and N // cand >= 2:
            bt = cand
            break

    def blk_bytes(ct):
        return bt * ct * HW * elem_bytes

    if blk_bytes(C) <= block_budget_bytes:
        return bt, C

    # Largest divisor of C that is a multiple of the sublane pack and fits.
    for ct in range(C, 0, -1):
        if C % ct == 0 and ct % sub == 0 and blk_bytes(ct) <= block_budget_bytes:
            return bt, ct

    # No clean tiling (e.g. C not a multiple of `sub`): fall back to full C.
    return bt, C


def _make_kernel(C, H, W, BT, GUARD):
    HW = H * W
    K = KSIZE
    inv_c = 1.0 / float(C)  # Python float -> inlined literal (no captured const)

    def kernel(w_ref, x_ref, o_ref, sum_ref, max_ref, feat_ref):
        # w_ref   : SMEM (2*7*7,) f32           -- conv weight, [c, ky, kx] flat
        # x_ref   : VMEM (BT, CT, HW) native    -- lane-dense channel tile
        # o_ref   : VMEM (BT, 1, HW) f32        -- resident across the C axis
        # sum_ref : VMEM (BT, 1, HW) f32        -- running channel sum
        # max_ref : VMEM (BT, 1, HW) f32        -- running channel max
        # feat_ref: VMEM (2, HW + 2*GUARD) f32  -- zero-guarded flat [avg, max]
        c_step = pl.program_id(1)

        @pl.when(c_step == 0)
        def _init():
            sum_ref[...] = jnp.zeros_like(sum_ref)
            max_ref[...] = jnp.full(max_ref.shape, -jnp.inf, jnp.float32)

        xb = x_ref[...].astype(jnp.float32)                     # (BT, CT, HW)
        sum_ref[...] = sum_ref[...] + jnp.sum(xb, axis=1, keepdims=True)
        max_ref[...] = jnp.maximum(max_ref[...],
                                   jnp.max(xb, axis=1, keepdims=True))

        @pl.when(c_step == pl.num_programs(1) - 1)
        def _finalize():
            # Zero once per batch tile: guards stay zero, interior is fully
            # rewritten for every b below.
            feat_ref[...] = jnp.zeros_like(feat_ref)

            # Column-validity masks (depend on kx only): handles the left/right
            # zero padding.  Top/bottom padding is handled by the zero guard
            # bands of feat_ref (row-invalid & column-valid reads always land
            # in a guard; row-invalid & column-invalid reads are masked here).
            col = lax.broadcasted_iota(jnp.int32, (1, HW), 1) % W
            col_masks = []
            for kx in range(K):
                dx = kx - PAD
                if dx < 0:
                    col_masks.append(col >= -dx)
                elif dx > 0:
                    col_masks.append(col < W - dx)
                else:
                    col_masks.append(None)

            def body(b, carry):
                # One bulk lane-dense (1, HW) store per channel.
                feat_ref[0:1, GUARD:GUARD + HW] = sum_ref[b] * inv_c
                feat_ref[1:2, GUARD:GUARD + HW] = max_ref[b]

                acc = jnp.zeros((1, HW), jnp.float32)
                for kx in range(K):
                    dx = kx - PAD
                    part = jnp.zeros((1, HW), jnp.float32)
                    for cc in range(2):
                        for ky in range(K):
                            dy = ky - PAD
                            off = GUARD + dy * W + dx            # static offset
                            w_s = w_ref[cc * K * K + ky * K + kx]  # SMEM scalar
                            part = part + w_s * feat_ref[cc:cc + 1,
                                                         pl.ds(off, HW)]
                    if col_masks[kx] is None:
                        acc = acc + part
                    else:
                        acc = acc + jnp.where(col_masks[kx], part, 0.0)

                o_ref[b] = jax.nn.sigmoid(acc)
                return carry

            lax.fori_loop(0, BT, body, 0)

    return kernel


def spatial_attention(x, weight):
    """x: (N, C, H, W) any float dtype; weight: (1, 2, 7, 7) -> (N, 1, H, W) f32."""
    N, C, H, W = x.shape
    HW = H * W

    x_flat = x.reshape(N, C, HW)                      # view, native dtype
    w_flat = weight.astype(jnp.float32).reshape(-1)   # (2*7*7,)

    BT, CT = _choose_tiles(N, C, HW, x.dtype)
    # Guard band >= 3*W + 3 taps, rounded up to 128 so the interior store is
    # lane-aligned.
    GUARD = ((3 * W + 3 + 127) // 128) * 128
    FLAT = HW + 2 * GUARD

    grid = (N // BT, C // CT)

    grid_spec = pltpu.PrefetchScalarGridSpec(
        num_scalar_prefetch=1,
        grid=grid,
        in_specs=[
            pl.BlockSpec((BT, CT, HW), lambda b, c, w: (b, c, 0)),
        ],
        # Same block index across the C axis -> output stays resident in VMEM;
        # written only on the last channel step.
        out_specs=pl.BlockSpec((BT, 1, HW), lambda b, c, w: (b, 0, 0)),
        scratch_shapes=[
            pltpu.VMEM((BT, 1, HW), jnp.float32),   # running channel sum
            pltpu.VMEM((BT, 1, HW), jnp.float32),   # running channel max
            pltpu.VMEM((2, FLAT), jnp.float32),     # zero-guarded flat [avg, max]
        ],
    )

    out_flat = pl.pallas_call(
        _make_kernel(C=C, H=H, W=W, BT=BT, GUARD=GUARD),
        out_shape=jax.ShapeDtypeStruct((N, 1, HW), jnp.float32),
        grid_spec=grid_spec,
        compiler_params=pltpu.CompilerParams(
            dimension_semantics=("parallel", "arbitrary"),
            vmem_limit_bytes=40 * 1024 * 1024),
    )(w_flat, x_flat)

    return out_flat.reshape(N, 1, H, W)


def reference_forward(x, weight):
    xf = x.astype(jnp.float32)
    avg = jnp.mean(xf, axis=1, keepdims=True)
    mx = jnp.max(xf, axis=1, keepdims=True)
    cat = jnp.concatenate([avg, mx], axis=1)
    y = lax.conv_general_dilated(
        cat, weight.astype(jnp.float32), window_strides=(1, 1),
        padding=[(PAD, PAD), (PAD, PAD)],
        dimension_numbers=("NCHW", "OIHW", "NCHW"))
    return jax.nn.sigmoid(y)


if __name__ == "__main__":
    key = jax.random.PRNGKey(0)
    kx, kw = jax.random.split(key)

    N, C, H, W = 2, 4, 16, 16
    x = jax.random.normal(kx, (N, C, H, W), dtype=jnp.float32)

    # Deterministic conv weight init (PyTorch-style kaiming-uniform bound).
    fan_in = 2 * KSIZE * KSIZE
    bound = 1.0 / float(fan_in) ** 0.5
    weight = jax.random.uniform(
        kw, (1, 2, KSIZE, KSIZE), dtype=jnp.float32,
        minval=-bound, maxval=bound)

    out = jax.block_until_ready(spatial_attention(x, weight))

    ref = reference_forward(x, weight)
    assert out.shape == (N, 1, H, W)
    err = jnp.max(jnp.abs(out - ref))
    assert jnp.allclose(out, ref, atol=1e-5, rtol=1e-5), f"max abs err = {err}"

    print("KERNEL_OK")
</pallas_src>

<mosaic_0001>
module attributes {stable_mosaic.version = 11 : i64} {
  func.func @kernel(%arg0: i32, %arg1: i32, %arg2: memref<98xf32, #tpu.memory_space<smem>>, %arg3: memref<1x4x256xf32, #tpu.memory_space<vmem>>, %arg4: memref<1x1x256xf32, #tpu.memory_space<vmem>>, %arg5: memref<1x1x256xf32, #tpu.memory_space<vmem>>, %arg6: memref<1x1x256xf32, #tpu.memory_space<vmem>>, %arg7: memref<2x512xf32, #tpu.memory_space<vmem>>) attributes {dimension_semantics = [#tpu.dimension_semantics<parallel>, #tpu.dimension_semantics<arbitrary>], iteration_bounds = array<i64: 2, 1>, scalar_prefetch = 1 : i64, scratch_operands = 3 : i64, tpu.core_type = #tpu.core_type<tc>, window_params = [{transform_indices = @transform_0, window_bounds = array<i64: 1, 4, 256>}, {transform_indices = @transform_1, window_bounds = array<i64: 1, 1, 256>}]} {
    %c0_i32 = arith.constant 0 : i32
    %0 = arith.cmpi eq, %arg1, %c0_i32 : i32
    %1 = arith.extui %0 : i1 to i32
    %c0_i32_0 = arith.constant 0 : i32
    %2 = arith.cmpi ne, %1, %c0_i32_0 : i32
    scf.if %2 {
      %cst_18 = arith.constant 0.000000e+00 : f32
      %17 = vector.broadcast %cst_18 : f32 to vector<1x1x256xf32>
      %c0_19 = arith.constant 0 : index
      %c0_20 = arith.constant 0 : index
      %c0_21 = arith.constant 0 : index
      %18 = vector.load %arg5[%c0_19, %c0_20, %c0_21] : memref<1x1x256xf32, #tpu.memory_space<vmem>>, vector<1x1x256xf32>
      tpu.vector_store %arg5[%c0_19, %c0_20, %c0_21], %17 {strides = array<i32>} : memref<1x1x256xf32, #tpu.memory_space<vmem>>, vector<1x1x256xf32>,
      %cst_22 = arith.constant 0xFF800000 : f32
      %19 = vector.broadcast %cst_22 : f32 to vector<1x1x256xf32>
      %c0_23 = arith.constant 0 : index
      %c0_24 = arith.constant 0 : index
      %c0_25 = arith.constant 0 : index
      %20 = vector.load %arg6[%c0_23, %c0_24, %c0_25] : memref<1x1x256xf32, #tpu.memory_space<vmem>>, vector<1x1x256xf32>
      tpu.vector_store %arg6[%c0_23, %c0_24, %c0_25], %19 {strides = array<i32>} : memref<1x1x256xf32, #tpu.memory_space<vmem>>, vector<1x1x256xf32>,
    } else {
    }
    %c0 = arith.constant 0 : index
    %c0_1 = arith.constant 0 : index
    %c0_2 = arith.constant 0 : index
    %3 = vector.load %arg3[%c0, %c0_1, %c0_2] : memref<1x4x256xf32, #tpu.memory_space<vmem>>, vector<1x4x256xf32>
    %c0_3 = arith.constant 0 : index
    %c0_4 = arith.constant 0 : index
    %c0_5 = arith.constant 0 : index
    %4 = vector.load %arg5[%c0_3, %c0_4, %c0_5] : memref<1x1x256xf32, #tpu.memory_space<vmem>>, vector<1x1x256xf32>
    %cst = arith.constant dense<0.000000e+00> : vector<1x256xf32>
    %5 = vector.multi_reduction <add>, %3, %cst [1] : vector<1x4x256xf32> to vector<1x256xf32>
    %6 = vector.shape_cast %5 : vector<1x256xf32> to vector<1x1x256xf32>
    %7 = arith.addf %4, %6 : vector<1x1x256xf32>
    %c0_6 = arith.constant 0 : index
    %c0_7 = arith.constant 0 : index
    %c0_8 = arith.constant 0 : index
    %8 = vector.load %arg5[%c0_6, %c0_7, %c0_8] : memref<1x1x256xf32, #tpu.memory_space<vmem>>, vector<1x1x256xf32>
    tpu.vector_store %arg5[%c0_6, %c0_7, %c0_8], %7 {strides = array<i32>} : memref<1x1x256xf32, #tpu.memory_space<vmem>>, vector<1x1x256xf32>,
    %c0_9 = arith.constant 0 : index
    %c0_10 = arith.constant 0 : index
    %c0_11 = arith.constant 0 : index
    %9 = vector.load %arg6[%c0_9, %c0_10, %c0_11] : memref<1x1x256xf32, #tpu.memory_space<vmem>>, vector<1x1x256xf32>
    %cst_12 = arith.constant dense<0xFF800000> : vector<1x256xf32>
    %10 = vector.multi_reduction <maximumf>, %3, %cst_12 [1] : vector<1x4x256xf32> to vector<1x256xf32>
    %11 = vector.shape_cast %10 : vector<1x256xf32> to vector<1x1x256xf32>
    %12 = arith.maximumf %9, %11 : vector<1x1x256xf32>
    %c0_13 = arith.constant 0 : index
    %c0_14 = arith.constant 0 : index
    %c0_15 = arith.constant 0 : index
    %13 = vector.load %arg6[%c0_13, %c0_14, %c0_15] : memref<1x1x256xf32, #tpu.memory_space<vmem>>, vector<1x1x256xf32>
    tpu.vector_store %arg6[%c0_13, %c0_14, %c0_15], %12 {strides = array<i32>} : memref<1x1x256xf32, #tpu.memory_space<vmem>>, vector<1x1x256xf32>,
    %c0_i32_16 = arith.constant 0 : i32
    %14 = arith.cmpi eq, %arg1, %c0_i32_16 : i32
    %15 = arith.extui %14 : i1 to i32
    %c0_i32_17 = arith.constant 0 : i32
    %16 = arith.cmpi ne, %15, %c0_i32_17 : i32
    scf.if %16 {
      %cst_18 = arith.constant 0.000000e+00 : f32
      %17 = vector.broadcast %cst_18 : f32 to vector<2x512xf32>
      %c0_19 = arith.constant 0 : index
      %c0_20 = arith.constant 0 : index
      %18 = vector.load %arg7[%c0_19, %c0_20] : memref<2x512xf32, #tpu.memory_space<vmem>>, vector<2x512xf32>
      tpu.vector_store %arg7[%c0_19, %c0_20], %17 {strides = array<i32>} : memref<2x512xf32, #tpu.memory_space<vmem>>, vector<2x512xf32>,
      %19 = tpu.iota {dimensions = array<i32: 1>} : vector<1x256xi32>
      %c16_i32 = arith.constant 16 : i32
      %c0_i32_21 = arith.constant 0 : i32
      %20 = arith.cmpi eq, %c16_i32, %c0_i32_21 : i32
      %c1_i32 = arith.constant 1 : i32
      %21 = arith.select %20, %c1_i32, %c16_i32 : i32
      %22 = vector.broadcast %21 : i32 to vector<1x256xi32>
      %23 = arith.remsi %19, %22 : vector<1x256xi32>
      %c0_i32_22 = arith.constant 0 : i32
      %24 = vector.broadcast %c0_i32_22 : i32 to vector<1x256xi32>
      %25 = arith.cmpi ne, %23, %24 : vector<1x256xi32>
      %c0_i32_23 = arith.constant 0 : i32
      %26 = vector.broadcast %c0_i32_23 : i32 to vector<1x256xi32>
      %27 = arith.cmpi slt, %23, %26 : vector<1x256xi32>
      %c0_i32_24 = arith.constant 0 : i32
      %28 = arith.cmpi slt, %21, %c0_i32_24 : i32
      %29 = vector.broadcast %28 : i1 to vector<1x256xi1>
      %30 = vector.broadcast %29 : vector<1x256xi1> to vector<1x256xi1>
      %31 = arith.xori %27, %30 : vector<1x256xi1>
      %32 = arith.andi %31, %25 : vector<1x256xi1>
      %33 = vector.broadcast %21 : i32 to vector<1x256xi32>
      %34 = arith.addi %23, %33 : vector<1x256xi32>
      %35 = arith.select %32, %34, %23 : vector<1x256xi1>, vector<1x256xi32>
      %c3_i32 = arith.constant 3 : i32
      %36 = vector.broadcast %c3_i32 : i32 to vector<1x256xi32>
      %37 = arith.cmpi sge, %35, %36 : vector<1x256xi32>
      %c2_i32 = arith.constant 2 : i32
      %38 = vector.broadcast %c2_i32 : i32 to vector<1x256xi32>
      %39 = arith.cmpi sge, %35, %38 : vector<1x256xi32>
      %c1_i32_25 = arith.constant 1 : i32
      %40 = vector.broadcast %c1_i32_25 : i32 to vector<1x256xi32>
      %41 = arith.cmpi sge, %35, %40 : vector<1x256xi32>
      %c15_i32 = arith.constant 15 : i32
      %42 = vector.broadcast %c15_i32 : i32 to vector<1x256xi32>
      %43 = arith.cmpi slt, %35, %42 : vector<1x256xi32>
      %c14_i32 = arith.constant 14 : i32
      %44 = vector.broadcast %c14_i32 : i32 to vector<1x256xi32>
      %45 = arith.cmpi slt, %35, %44 : vector<1x256xi32>
      %c13_i32 = arith.constant 13 : i32
      %46 = vector.broadcast %c13_i32 : i32 to vector<1x256xi32>
      %47 = arith.cmpi slt, %35, %46 : vector<1x256xi32>
      %c0_i32_26 = arith.constant 0 : i32
      %48 = arith.index_cast %c0_i32_26 : i32 to index
      %c0_27 = arith.constant 0 : index
      %c0_28 = arith.constant 0 : index
      %49 = vector.load %arg5[%48, %c0_27, %c0_28] : memref<1x1x256xf32, #tpu.memory_space<vmem>>, vector<1x1x256xf32>
      %50 = vector.shape_cast %49 : vector<1x1x256xf32> to vector<1x256xf32>
      %cst_29 = arith.constant 2.500000e-01 : f32
      %51 = vector.broadcast %cst_29 : f32 to vector<1x256xf32>
      %52 = arith.mulf %50, %51 : vector<1x256xf32>
      %c0_30 = arith.constant 0 : index
      %c128 = arith.constant 128 : index
      %53 = vector.load %arg7[%c0_30, %c128] : memref<2x512xf32, #tpu.memory_space<vmem>>, vector<1x256xf32>
      tpu.vector_store %arg7[%c0_30, %c128], %52 {strides = array<i32>} : memref<2x512xf32, #tpu.memory_space<vmem>>, vector<1x256xf32>,
      %54 = arith.index_cast %c0_i32_26 : i32 to index
      %c0_31 = arith.constant 0 : index
      %c0_32 = arith.constant 0 : index
      %55 = vector.load %arg6[%54, %c0_31, %c0_32] : memref<1x1x256xf32, #tpu.memory_space<vmem>>, vector<1x1x256xf32>
      %56 = vector.shape_cast %55 : vector<1x1x256xf32> to vector<1x256xf32>
      %c1 = arith.constant 1 : index
      %c128_33 = arith.constant 128 : index
      %57 = vector.load %arg7[%c1, %c128_33] : memref<2x512xf32, #tpu.memory_space<vmem>>, vector<1x256xf32>
      tpu.vector_store %arg7[%c1, %c128_33], %56 {strides = array<i32>} : memref<2x512xf32, #tpu.memory_space<vmem>>, vector<1x256xf32>,
      %cst_34 = arith.constant 0.000000e+00 : f32
      %58 = vector.broadcast %cst_34 : f32 to vector<1x256xf32>
      %cst_35 = arith.constant 0.000000e+00 : f32
      %59 = vector.broadcast %cst_35 : f32 to vector<1x256xf32>
      %c0_36 = arith.constant 0 : index
      %60 = memref.load %arg2[%c0_36] : memref<98xf32, #tpu.memory_space<smem>>
      %c0_37 = arith.constant 0 : index
      %c77 = arith.constant 77 : index
      %61 = vector.load %arg7[%c0_37, %c77] : memref<2x512xf32, #tpu.memory_space<vmem>>, vector<1x256xf32>
      %62 = vector.broadcast %60 : f32 to vector<1x256xf32>
      %63 = arith.mulf %62, %61 : vector<1x256xf32>
      %64 = arith.addf %59, %63 : vector<1x256xf32>
      %c7 = arith.constant 7 : index
      %65 = memref.load %arg2[%c7] : memref<98xf32, #tpu.memory_space<smem>>
      %c0_38 = arith.constant 0 : index
      %c93 = arith.constant 93 : index
      %66 = vector.load %arg7[%c0_38, %c93] : memref<2x512xf32, #tpu.memory_space<vmem>>, vector<1x256xf32>
      %67 = vector.broadcast %65 : f32 to vector<1x256xf32>
      %68 = arith.mulf %67, %66 : vector<1x256xf32>
      %69 = arith.addf %64, %68 : vector<1x256xf32>
      %c14 = arith.constant 14 : index
      %70 = memref.load %arg2[%c14] : memref<98xf32, #tpu.memory_space<smem>>
      %c0_39 = arith.constant 0 : index
      %c109 = arith.constant 109 : index
      %71 = vector.load %arg7[%c0_39, %c109] : memref<2x512xf32, #tpu.memory_space<vmem>>, vector<1x256xf32>
      %72 = vector.broadcast %70 : f32 to vector<1x256xf32>
      %73 = arith.mulf %72, %71 : vector<1x256xf32>
      %74 = arith.addf %69, %73 : vector<1x256xf32>
      %c21 = arith.constant 21 : index
      %75 = memref.load %arg2[%c21] : memref<98xf32, #tpu.memory_space<smem>>
      %c0_40 = arith.constant 0 : index
      %c125 = arith.constant 125 : index
      %76 = vector.load %arg7[%c0_40, %c125] : memref<2x512xf32, #tpu.memory_space<vmem>>, vector<1x256xf32>
      %77 = vector.broadcast %75 : f32 to vector<1x256xf32>
      %78 = arith.mulf %77, %76 : vector<1x256xf32>
      %79 = arith.addf %74, %78 : vector<1x256xf32>
      %c28 = arith.constant 28 : index
      %80 = memref.load %arg2[%c28] : memref<98xf32, #tpu.memory_space<smem>>
      %c0_41 = arith.constant 0 : index
      %c141 = arith.constant 141 : index
      %81 = vector.load %arg7[%c0_41, %c141] : memref<2x512xf32, #tpu.memory_space<vmem>>, vector<1x256xf32>
      %82 = vector.broadcast %80 : f32 to vector<1x256xf32>
      %83 = arith.mulf %82, %81 : vector<1x256xf32>
      %84 = arith.addf %79, %83 : vector<1x256xf32>
      %c35 = arith.constant 35 : index
      %85 = memref.load %arg2[%c35] : memref<98xf32, #tpu.memory_space<smem>>
      %c0_42 = arith.constant 0 : index
      %c157 = arith.constant 157 : index
      %86 = vector.load %arg7[%c0_42, %c157] : memref<2x512xf32, #tpu.memory_space<vmem>>, vector<1x256xf32>
      %87 = vector.broadcast %85 : f32 to vector<1x256xf32>
      %88 = arith.mulf %87, %86 : vector<1x256xf32>
      %89 = arith.addf %84, %88 : vector<1x256xf32>
      %c42 = arith.constant 42 : index
      %90 = memref.load %arg2[%c42] : memref<98xf32, #tpu.memory_space<smem>>
      %c0_43 = arith.constant 0 : index
      %c173 = arith.constant 173 : index
      %91 = vector.load %arg7[%c0_43, %c173] : memref<2x512xf32, #tpu.memory_space<vmem>>, vector<1x256xf32>
      %92 = vector.broadcast %90 : f32 to vector<1x256xf32>
      %93 = arith.mulf %92, %91 : vector<1x256xf32>
      %94 = arith.addf %89, %93 : vector<1x256xf32>
      %c49 = arith.constant 49 : index
      %95 = memref.load %arg2[%c49] : memref<98xf32, #tpu.memory_space<smem>>
      %c1_44 = arith.constant 1 : index
      %c77_45 = arith.constant 77 : index
      %96 = vector.load %arg7[%c1_44, %c77_45] : memref<2x512xf32, #tpu.memory_space<vmem>>, vector<1x256xf32>
      %97 = vector.broadcast %95 : f32 to vector<1x256xf32>
      %98 = arith.mulf %97, %96 : vector<1x256xf32>
      %99 = arith.addf %94, %98 : vector<1x256xf32>
      %c56 = arith.constant 56 : index
      %100 = memref.load %arg2[%c56] : memref<98xf32, #tpu.memory_space<smem>>
      %c1_46 = arith.constant 1 : index
      %c93_47 = arith.constant 93 : index
      %101 = vector.load %arg7[%c1_46, %c93_47] : memref<2x512xf32, #tpu.memory_space<vmem>>, vector<1x256xf32>
      %102 = vector.broadcast %100 : f32 to vector<1x256xf32>
      %103 = arith.mulf %102, %101 : vector<1x256xf32>
      %104 = arith.addf %99, %103 : vector<1x256xf32>
      %c63 = arith.constant 63 : index
      %105 = memref.load %arg2[%c63] : memref<98xf32, #tpu.memory_space<smem>>
      %c1_48 = arith.constant 1 : index
      %c109_49 = arith.constant 109 : index
      %106 = vector.load %arg7[%c1_48, %c109_49] : memref<2x512xf32, #tpu.memory_space<vmem>>, vector<1x256xf32>
      %107 = vector.broadcast %105 : f32 to vector<1x256xf32>
      %108 = arith.mulf %107, %106 : vector<1x256xf32>
      %109 = arith.addf %104, %108 : vector<1x256xf32>
      %c70 = arith.constant 70 : index
      %110 = memref.load %arg2[%c70] : memref<98xf32, #tpu.memory_space<smem>>
      %c1_50 = arith.constant 1 : index
      %c125_51 = arith.constant 125 : index
      %111 = vector.load %arg7[%c1_50, %c125_51] : memref<2x512xf32, #tpu.memory_space<vmem>>, vector<1x256xf32>
      %112 = vector.broadcast %110 : f32 to vector<1x256xf32>
      %113 = arith.mulf %112, %111 : vector<1x256xf32>
      %114 = arith.addf %109, %113 : vector<1x256xf32>
      %c77_52 = arith.constant 77 : index
      %115 = memref.load %arg2[%c77_52] : memref<98xf32, #tpu.memory_space<smem>>
      %c1_53 = arith.constant 1 : index
      %c141_54 = arith.constant 141 : index
      %116 = vector.load %arg7[%c1_53, %c141_54] : memref<2x512xf32, #tpu.memory_space<vmem>>, vector<1x256xf32>
      %117 = vector.broadcast %115 : f32 to vector<1x256xf32>
      %118 = arith.mulf %117, %116 : vector<1x256xf32>
      %119 = arith.addf %114, %118 : vector<1x256xf32>
      %c84 = arith.constant 84 : index
      %120 = memref.load %arg2[%c84] : memref<98xf32, #tpu.memory_space<smem>>
      %c1_55 = arith.constant 1 : index
      %c157_56 = arith.constant 157 : index
      %121 = vector.load %arg7[%c1_55, %c157_56] : memref<2x512xf32, #tpu.memory_space<vmem>>, vector<1x256xf32>
      %122 = vector.broadcast %120 : f32 to vector<1x256xf32>
      %123 = arith.mulf %122, %121 : vector<1x256xf32>
      %124 = arith.addf %119, %123 : vector<1x256xf32>
      %c91 = arith.constant 91 : index
      %125 = memref.load %arg2[%c91] : memref<98xf32, #tpu.memory_space<smem>>
      %c1_57 = arith.constant 1 : index
      %c173_58 = arith.constant 173 : index
      %126 = vector.load %arg7[%c1_57, %c173_58] : memref<2x512xf32, #tpu.memory_space<vmem>>, vector<1x256xf32>
      %127 = vector.broadcast %125 : f32 to vector<1x256xf32>
      %128 = arith.mulf %127, %126 : vector<1x256xf32>
      %129 = arith.addf %124, %128 : vector<1x256xf32>
      %cst_59 = arith.constant 0.000000e+00 : f32
      %130 = vector.broadcast %cst_59 : f32 to vector<1x256xf32>
      %131 = arith.select %37, %129, %130 : vector<1x256xi1>, vector<1x256xf32>
      %132 = arith.addf %58, %131 : vector<1x256xf32>
      %cst_60 = arith.constant 0.000000e+00 : f32
      %133 = vector.broadcast %cst_60 : f32 to vector<1x256xf32>
      %c1_61 = arith.constant 1 : index
      %134 = memref.load %arg2[%c1_61] : memref<98xf32, #tpu.memory_space<smem>>
      %c0_62 = arith.constant 0 : index
      %c78 = arith.constant 78 : index
      %135 = vector.load %arg7[%c0_62, %c78] : memref<2x512xf32, #tpu.memory_space<vmem>>, vector<1x256xf32>
      %136 = vector.broadcast %134 : f32 to vector<1x256xf32>
      %137 = arith.mulf %136, %135 : vector<1x256xf32>
      %138 = arith.addf %133, %137 : vector<1x256xf32>
      %c8 = arith.constant 8 : index
      %139 = memref.load %arg2[%c8] : memref<98xf32, #tpu.memory_space<smem>>
      %c0_63 = arith.constant 0 : index
      %c94 = arith.constant 94 : index
      %140 = vector.load %arg7[%c0_63, %c94] : memref<2x512xf32, #tpu.memory_space<vmem>>, vector<1x256xf32>
      %141 = vector.broadcast %139 : f32 to vector<1x256xf32>
      %142 = arith.mulf %141, %140 : vector<1x256xf32>
      %143 = arith.addf %138, %142 : vector<1x256xf32>
      %c15 = arith.constant 15 : index
      %144 = memref.load %arg2[%c15] : memref<98xf32, #tpu.memory_space<smem>>
      %c0_64 = arith.constant 0 : index
      %c110 = arith.constant 110 : index
      %145 = vector.load %arg7[%c0_64, %c110] : memref<2x512xf32, #tpu.memory_space<vmem>>, vector<1x256xf32>
      %146 = vector.broadcast %144 : f32 to vector<1x256xf32>
      %147 = arith.mulf %146, %145 : vector<1x256xf32>
      %148 = arith.addf %143, %147 : vector<1x256xf32>
      %c22 = arith.constant 22 : index
      %149 = memref.load %arg2[%c22] : memref<98xf32, #tpu.memory_space<smem>>
      %c0_65 = arith.constant 0 : index
      %c126 = arith.constant 126 : index
      %150 = vector.load %arg7[%c0_65, %c126] : memref<2x512xf32, #tpu.memory_space<vmem>>, vector<1x256xf32>
      %151 = vector.broadcast %149 : f32 to vector<1x256xf32>
      %152 = arith.mulf %151, %150 : vector<1x256xf32>
      %153 = arith.addf %148, %152 : vector<1x256xf32>
      %c29 = arith.constant 29 : index
      %154 = memref.load %arg2[%c29] : memref<98xf32, #tpu.memory_space<smem>>
      %c0_66 = arith.constant 0 : index
      %c142 = arith.constant 142 : index
      %155 = vector.load %arg7[%c0_66, %c142] : memref<2x512xf32, #tpu.memory_space<vmem>>, vector<1x256xf32>
      %156 = vector.broadcast %154 : f32 to vector<1x256xf32>
      %157 = arith.mulf %156, %155 : vector<1x256xf32>
      %158 = arith.addf %153, %157 : vector<1x256xf32>
      %c36 = arith.constant 36 : index
      %159 = memref.load %arg2[%c36] : memref<98xf32, #tpu.memory_space<smem>>
      %c0_67 = arith.constant 0 : index
      %c158 = arith.constant 158 : index
      %160 = vector.load %arg7[%c0_67, %c158] : memref<2x512xf32, #tpu.memory_space<vmem>>, vector<1x256xf32>
      %161 = vector.broadcast %159 : f32 to vector<1x256xf32>
      %162 = arith.mulf %161, %160 : vector<1x256xf32>
      %163 = arith.addf %158, %162 : vector<1x256xf32>
      %c43 = arith.constant 43 : index
      %164 = memref.load %arg2[%c43] : memref<98xf32, #tpu.memory_space<smem>>
      %c0_68 = arith.constant 0 : index
      %c174 = arith.constant 174 : index
      %165 = vector.load %arg7[%c0_68, %c174] : memref<2x512xf32, #tpu.memory_space<vmem>>, vector<1x256xf32>
      %166 = vector.broadcast %164 : f32 to vector<1x256xf32>
      %167 = arith.mulf %166, %165 : vector<1x256xf32>
      %168 = arith.addf %163, %167 : vector<1x256xf32>
      %c50 = arith.constant 50 : index
      %169 = memref.load %arg2[%c50] : memref<98xf32, #tpu.memory_space<smem>>
      %c1_69 = arith.constant 1 : index
      %c78_70 = arith.constant 78 : index
      %170 = vector.load %arg7[%c1_69, %c78_70] : memref<2x512xf32, #tpu.memory_space<vmem>>, vector<1x256xf32>
      %171 = vector.broadcast %169 : f32 to vector<1x256xf32>
      %172 = arith.mulf %171, %170 : vector<1x256xf32>
      %173 = arith.addf %168, %172 : vector<1x256xf32>
      %c57 = arith.constant 57 : index
      %174 = memref.load %arg2[%c57] : memref<98xf32, #tpu.memory_space<smem>>
      %c1_71 = arith.constant 1 : index
      %c94_72 = arith.constant 94 : index
      %175 = vector.load %arg7[%c1_71, %c94_72] : memref<2x512xf32, #tpu.memory_space<vmem>>, vector<1x256xf32>
      %176 = vector.broadcast %174 : f32 to vector<1x256xf32>
      %177 = arith.mulf %176, %175 : vector<1x256xf32>
      %178 = arith.addf %173, %177 : vector<1x256xf32>
      %c64 = arith.constant 64 : index
      %179 = memref.load %arg2[%c64] : memref<98xf32, #tpu.memory_space<smem>>
      %c1_73 = arith.constant 1 : index
      %c110_74 = arith.constant 110 : index
      %180 = vector.load %arg7[%c1_73, %c110_74] : memref<2x512xf32, #tpu.memory_space<vmem>>, vector<1x256xf32>
      %181 = vector.broadcast %179 : f32 to vector<1x256xf32>
      %182 = arith.mulf %181, %180 : vector<1x256xf32>
      %183 = arith.addf %178, %182 : vector<1x256xf32>
      %c71 = arith.constant 71 : index
      %184 = memref.load %arg2[%c71] : memref<98xf32, #tpu.memory_space<smem>>
      %c1_75 = arith.constant 1 : index
      %c126_76 = arith.constant 126 : index
      %185 = vector.load %arg7[%c1_75, %c126_76] : memref<2x512xf32, #tpu.memory_space<vmem>>, vector<1x256xf32>
      %186 = vector.broadcast %184 : f32 to vector<1x256xf32>
      %187 = arith.mulf %186, %185 : vector<1x256xf32>
      %188 = arith.addf %183, %187 : vector<1x256xf32>
      %c78_77 = arith.constant 78 : index
      %189 = memref.load %arg2[%c78_77] : memref<98xf32, #tpu.memory_space<smem>>
      %c1_78 = arith.constant 1 : index
      %c142_79 = arith.constant 142 : index
      %190 = vector.load %arg7[%c1_78, %c142_79] : memref<2x512xf32, #tpu.memory_space<vmem>>, vector<1x256xf32>
      %191 = vector.broadcast %189 : f32 to vector<1x256xf32>
      %192 = arith.mulf %191, %190 : vector<1x256xf32>
      %193 = arith.addf %188, %192 : vector<1x256xf32>
      %c85 = arith.constant 85 : index
      %194 = memref.load %arg2[%c85] : memref<98xf32, #tpu.memory_space<smem>>
      %c1_80 = arith.constant 1 : index
      %c158_81 = arith.constant 158 : index
      %195 = vector.load %arg7[%c1_80, %c158_81] : memref<2x512xf32, #tpu.memory_space<vmem>>, vector<1x256xf32>
      %196 = vector.broadcast %194 : f32 to vector<1x256xf32>
      %197 = arith.mulf %196, %195 : vector<1x256xf32>
      %198 = arith.addf %193, %197 : vector<1x256xf32>
      %c92 = arith.constant 92 : index
      %199 = memref.load %arg2[%c92] : memref<98xf32, #tpu.memory_space<smem>>
      %c1_82 = arith.constant 1 : index
      %c174_83 = arith.constant 174 : index
      %200 = vector.load %arg7[%c1_82, %c174_83] : memref<2x512xf32, #tpu.memory_space<vmem>>, vector<1x256xf32>
      %201 = vector.broadcast %199 : f32 to vector<1x256xf32>
      %202 = arith.mulf %201, %200 : vector<1x256xf32>
      %203 = arith.addf %198, %202 : vector<1x256xf32>
      %cst_84 = arith.constant 0.000000e+00 : f32
      %204 = vector.broadcast %cst_84 : f32 to vector<1x256xf32>
      %205 = arith.select %39, %203, %204 : vector<1x256xi1>, vector<1x256xf32>
      %206 = arith.addf %132, %205 : vector<1x256xf32>
      %cst_85 = arith.constant 0.000000e+00 : f32
      %207 = vector.broadcast %cst_85 : f32 to vector<1x256xf32>
      %c2 = arith.constant 2 : index
      %208 = memref.load %arg2[%c2] : memref<98xf32, #tpu.memory_space<smem>>
      %c0_86 = arith.constant 0 : index
      %c79 = arith.constant 79 : index
      %209 = vector.load %arg7[%c0_86, %c79] : memref<2x512xf32, #tpu.memory_space<vmem>>, vector<1x256xf32>
      %210 = vector.broadcast %208 : f32 to vector<1x256xf32>
      %211 = arith.mulf %210, %209 : vector<1x256xf32>
      %212 = arith.addf %207, %211 : vector<1x256xf32>
      %c9 = arith.constant 9 : index
      %213 = memref.load %arg2[%c9] : memref<98xf32, #tpu.memory_space<smem>>
      %c0_87 = arith.constant 0 : index
      %c95 = arith.constant 95 : index
      %214 = vector.load %arg7[%c0_87, %c95] : memref<2x512xf32, #tpu.memory_space<vmem>>, vector<1x256xf32>
      %215 = vector.broadcast %213 : f32 to vector<1x256xf32>
      %216 = arith.mulf %215, %214 : vector<1x256xf32>
      %217 = arith.addf %212, %216 : vector<1x256xf32>
      %c16 = arith.constant 16 : index
      %218 = memref.load %arg2[%c16] : memref<98xf32, #tpu.memory_space<smem>>
      %c0_88 = arith.constant 0 : index
      %c111 = arith.constant 111 : index
      %219 = vector.load %arg7[%c0_88, %c111] : memref<2x512xf32, #tpu.memory_space<vmem>>, vector<1x256xf32>
      %220 = vector.broadcast %218 : f32 to vector<1x256xf32>
      %221 = arith.mulf %220, %219 : vector<1x256xf32>
      %222 = arith.addf %217, %221 : vector<1x256xf32>
      %c23 = arith.constant 23 : index
      %223 = memref.load %arg2[%c23] : memref<98xf32, #tpu.memory_space<smem>>
      %c0_89 = arith.constant 0 : index
      %c127 = arith.constant 127 : index
      %224 = vector.load %arg7[%c0_89, %c127] : memref<2x512xf32, #tpu.memory_space<vmem>>, vector<1x256xf32>
      %225 = vector.broadcast %223 : f32 to vector<1x256xf32>
      %226 = arith.mulf %225, %224 : vector<1x256xf32>
      %227 = arith.addf %222, %226 : vector<1x256xf32>
      %c30 = arith.constant 30 : index
      %228 = memref.load %arg2[%c30] : memref<98xf32, #tpu.memory_space<smem>>
      %c0_90 = arith.constant 0 : index
      %c143 = arith.constant 143 : index
      %229 = vector.load %arg7[%c0_90, %c143] : memref<2x512xf32, #tpu.memory_space<vmem>>, vector<1x256xf32>
      %230 = vector.broadcast %228 : f32 to vector<1x256xf32>
      %231 = arith.mulf %230, %229 : vector<1x256xf32>
      %232 = arith.addf %227, %231 : vector<1x256xf32>
      %c37 = arith.constant 37 : index
      %233 = memref.load %arg2[%c37] : memref<98xf32, #tpu.memory_space<smem>>
      %c0_91 = arith.constant 0 : index
      %c159 = arith.constant 159 : index
      %234 = vector.load %arg7[%c0_91, %c159] : memref<2x512xf32, #tpu.memory_space<vmem>>, vector<1x256xf32>
      %235 = vector.broadcast %233 : f32 to vector<1x256xf32>
      %236 = arith.mulf %235, %234 : vector<1x256xf32>
      %237 = arith.addf %232, %236 : vector<1x256xf32>
      %c44 = arith.constant 44 : index
      %238 = memref.load %arg2[%c44] : memref<98xf32, #tpu.memory_space<smem>>
      %c0_92 = arith.constant 0 : index
      %c175 = arith.constant 175 : index
      %239 = vector.load %arg7[%c0_92, %c175] : memref<2x512xf32, #tpu.memory_space<vmem>>, vector<1x256xf32>
      %240 = vector.broadcast %238 : f32 to vector<1x256xf32>
      %241 = arith.mulf %240, %239 : vector<1x256xf32>
      %242 = arith.addf %237, %241 : vector<1x256xf32>
      %c51 = arith.constant 51 : index
      %243 = memref.load %arg2[%c51] : memref<98xf32, #tpu.memory_space<smem>>
      %c1_93 = arith.constant 1 : index
      %c79_94 = arith.constant 79 : index
      %244 = vector.load %arg7[%c1_93, %c79_94] : memref<2x512xf32, #tpu.memory_space<vmem>>, vector<1x256xf32>
      %245 = vector.broadcast %243 : f32 to vector<1x256xf32>
      %246 = arith.mulf %245, %244 : vector<1x256xf32>
      %247 = arith.addf %242, %246 : vector<1x256xf32>
      %c58 = arith.constant 58 : index
      %248 = memref.load %arg2[%c58] : memref<98xf32, #tpu.memory_space<smem>>
      %c1_95 = arith.constant 1 : index
      %c95_96 = arith.constant 95 : index
      %249 = vector.load %arg7[%c1_95, %c95_96] : memref<2x512xf32, #tpu.memory_space<vmem>>, vector<1x256xf32>
      %250 = vector.broadcast %248 : f32 to vector<1x256xf32>
      %251 = arith.mulf %250, %249 : vector<1x256xf32>
      %252 = arith.addf %247, %251 : vector<1x256xf32>
      %c65 = arith.constant 65 : index
      %253 = memref.load %arg2[%c65] : memref<98xf32, #tpu.memory_space<smem>>
      %c1_97 = arith.constant 1 : index
      %c111_98 = arith.constant 111 : index
      %254 = vector.load %arg7[%c1_97, %c111_98] : memref<2x512xf32, #tpu.memory_space<vmem>>, vector<1x256xf32>
      %255 = vector.broadcast %253 : f32 to vector<1x256xf32>
      %256 = arith.mulf %255, %254 : vector<1x256xf32>
      %257 = arith.addf %252, %256 : vector<1x256xf32>
      %c72 = arith.constant 72 : index
      %258 = memref.load %arg2[%c72] : memref<98xf32, #tpu.memory_space<smem>>
      %c1_99 = arith.constant 1 : index
      %c127_100 = arith.constant 127 : index
      %259 = vector.load %arg7[%c1_99, %c127_100] : memref<2x512xf32, #tpu.memory_space<vmem>>, vector<1x256xf32>
      %260 = vector.broadcast %258 : f32 to vector<1x256xf32>
      %261 = arith.mulf %260, %259 : vector<1x256xf32>
      %262 = arith.addf %257, %261 : vector<1x256xf32>
      %c79_101 = arith.constant 79 : index
      %263 = memref.load %arg2[%c79_101] : memref<98xf32, #tpu.memory_space<smem>>
      %c1_102 = arith.constant 1 : index
      %c143_103 = arith.constant 143 : index
      %264 = vector.load %arg7[%c1_102, %c143_103] : memref<2x512xf32, #tpu.memory_space<vmem>>, vector<1x256xf32>
      %265 = vector.broadcast %263 : f32 to vector<1x256xf32>
      %266 = arith.mulf %265, %264 : vector<1x256xf32>
      %267 = arith.addf %262, %266 : vector<1x256xf32>
      %c86 = arith.constant 86 : index
      %268 = memref.load %arg2[%c86] : memref<98xf32, #tpu.memory_space<smem>>
      %c1_104 = arith.constant 1 : index
      %c159_105 = arith.constant 159 : index
      %269 = vector.load %arg7[%c1_104, %c159_105] : memref<2x512xf32, #tpu.memory_space<vmem>>, vector<1x256xf32>
      %270 = vector.broadcast %268 : f32 to vector<1x256xf32>
      %271 = arith.mulf %270, %269 : vector<1x256xf32>
      %272 = arith.addf %267, %271 : vector<1x256xf32>
      %c93_106 = arith.constant 93 : index
      %273 = memref.load %arg2[%c93_106] : memref<98xf32, #tpu.memory_space<smem>>
      %c1_107 = arith.constant 1 : index
      %c175_108 = arith.constant 175 : index
      %274 = vector.load %arg7[%c1_107, %c175_108] : memref<2x512xf32, #tpu.memory_space<vmem>>, vector<1x256xf32>
      %275 = vector.broadcast %273 : f32 to vector<1x256xf32>
      %276 = arith.mulf %275, %274 : vector<1x256xf32>
      %277 = arith.addf %272, %276 : vector<1x256xf32>
      %cst_109 = arith.constant 0.000000e+00 : f32
      %278 = vector.broadcast %cst_109 : f32 to vector<1x256xf32>
      %279 = arith.select %41, %277, %278 : vector<1x256xi1>, vector<1x256xf32>
      %280 = arith.addf %206, %279 : vector<1x256xf32>
      %cst_110 = arith.constant 0.000000e+00 : f32
      %281 = vector.broadcast %cst_110 : f32 to vector<1x256xf32>
      %c3 = arith.constant 3 : index
      %282 = memref.load %arg2[%c3] : memref<98xf32, #tpu.memory_space<smem>>
      %c0_111 = arith.constant 0 : index
      %c80 = arith.constant 80 : index
      %283 = vector.load %arg7[%c0_111, %c80] : memref<2x512xf32, #tpu.memory_space<vmem>>, vector<1x256xf32>
      %284 = vector.broadcast %282 : f32 to vector<1x256xf32>
      %285 = arith.mulf %284, %283 : vector<1x256xf32>
      %286 = arith.addf %281, %285 : vector<1x256xf32>
      %c10 = arith.constant 10 : index
      %287 = memref.load %arg2[%c10] : memref<98xf32, #tpu.memory_space<smem>>
      %c0_112 = arith.constant 0 : index
      %c96 = arith.constant 96 : index
      %288 = vector.load %arg7[%c0_112, %c96] : memref<2x512xf32, #tpu.memory_space<vmem>>, vector<1x256xf32>
      %289 = vector.broadcast %287 : f32 to vector<1x256xf32>
      %290 = arith.mulf %289, %288 : vector<1x256xf32>
      %291 = arith.addf %286, %290 : vector<1x256xf32>
      %c17 = arith.constant 17 : index
      %292 = memref.load %arg2[%c17] : memref<98xf32, #tpu.memory_space<smem>>
      %c0_113 = arith.constant 0 : index
      %c112 = arith.constant 112 : index
      %293 = vector.load %arg7[%c0_113, %c112] : memref<2x512xf32, #tpu.memory_space<vmem>>, vector<1x256xf32>
      %294 = vector.broadcast %292 : f32 to vector<1x256xf32>
      %295 = arith.mulf %294, %293 : vector<1x256xf32>
      %296 = arith.addf %291, %295 : vector<1x256xf32>
      %c24 = arith.constant 24 : index
      %297 = memref.load %arg2[%c24] : memref<98xf32, #tpu.memory_space<smem>>
      %c0_114 = arith.constant 0 : index
      %c128_115 = arith.constant 128 : index
      %298 = vector.load %arg7[%c0_114, %c128_115] : memref<2x512xf32, #tpu.memory_space<vmem>>, vector<1x256xf32>
      %299 = vector.broadcast %297 : f32 to vector<1x256xf32>
      %300 = arith.mulf %299, %298 : vector<1x256xf32>
      %301 = arith.addf %296, %300 : vector<1x256xf32>
      %c31 = arith.constant 31 : index
      %302 = memref.load %arg2[%c31] : memref<98xf32, #tpu.memory_space<smem>>
      %c0_116 = arith.constant 0 : index
      %c144 = arith.constant 144 : index
      %303 = vector.load %arg7[%c0_116, %c144] : memref<2x512xf32, #tpu.memory_space<vmem>>, vector<1x256xf32>
      %304 = vector.broadcast %302 : f32 to vector<1x256xf32>
      %305 = arith.mulf %304, %303 : vector<1x256xf32>
      %306 = arith.addf %301, %305 : vector<1x256xf32>
      %c38 = arith.constant 38 : index
      %307 = memref.load %arg2[%c38] : memref<98xf32, #tpu.memory_space<smem>>
      %c0_117 = arith.constant 0 : index
      %c160 = arith.constant 160 : index
      %308 = vector.load %arg7[%c0_117, %c160] : memref<2x512xf32, #tpu.memory_space<vmem>>, vector<1x256xf32>
      %309 = vector.broadcast %307 : f32 to vector<1x256xf32>
      %310 = arith.mulf %309, %308 : vector<1x256xf32>
      %311 = arith.addf %306, %310 : vector<1x256xf32>
      %c45 = arith.constant 45 : index
      %312 = memref.load %arg2[%c45] : memref<98xf32, #tpu.memory_space<smem>>
      %c0_118 = arith.constant 0 : index
      %c176 = arith.constant 176 : index
      %313 = vector.load %arg7[%c0_118, %c176] : memref<2x512xf32, #tpu.memory_space<vmem>>, vector<1x256xf32>
      %314 = vector.broadcast %312 : f32 to vector<1x256xf32>
      %315 = arith.mulf %314, %313 : vector<1x256xf32>
      %316 = arith.addf %311, %315 : vector<1x256xf32>
      %c52 = arith.constant 52 : index
      %317 = memref.load %arg2[%c52] : memref<98xf32, #tpu.memory_space<smem>>
      %c1_119 = arith.constant 1 : index
      %c80_120 = arith.constant 80 : index
      %318 = vector.load %arg7[%c1_119, %c80_120] : memref<2x512xf32, #tpu.memory_space<vmem>>, vector<1x256xf32>
      %319 = vector.broadcast %317 : f32 to vector<1x256xf32>
      %320 = arith.mulf %319, %318 : vector<1x256xf32>
      %321 = arith.addf %316, %320 : vector<1x256xf32>
      %c59 = arith.constant 59 : index
      %322 = memref.load %arg2[%c59] : memref<98xf32, #tpu.memory_space<smem>>
      %c1_121 = arith.constant 1 : index
      %c96_122 = arith.constant 96 : index
      %323 = vector.load %arg7[%c1_121, %c96_122] : memref<2x512xf32, #tpu.memory_space<vmem>>, vector<1x256xf32>
      %324 = vector.broadcast %322 : f32 to vector<1x256xf32>
      %325 = arith.mulf %324, %323 : vector<1x256xf32>
      %326 = arith.addf %321, %325 : vector<1x256xf32>
      %c66 = arith.constant 66 : index
      %327 = memref.load %arg2[%c66] : memref<98xf32, #tpu.memory_space<smem>>
      %c1_123 = arith.constant 1 : index
      %c112_124 = arith.constant 112 : index
      %328 = vector.load %arg7[%c1_123, %c112_124] : memref<2x512xf32, #tpu.memory_space<vmem>>, vector<1x256xf32>
      %329 = vector.broadcast %327 : f32 to vector<1x256xf32>
      %330 = arith.mulf %329, %328 : vector<1x256xf32>
      %331 = arith.addf %326, %330 : vector<1x256xf32>
      %c73 = arith.constant 73 : index
      %332 = memref.load %arg2[%c73] : memref<98xf32, #tpu.memory_space<smem>>
      %c1_125 = arith.constant 1 : index
      %c128_126 = arith.constant 128 : index
      %333 = vector.load %arg7[%c1_125, %c128_126] : memref<2x512xf32, #tpu.memory_space<vmem>>, vector<1x256xf32>
      %334 = vector.broadcast %332 : f32 to vector<1x256xf32>
      %335 = arith.mulf %334, %333 : vector<1x256xf32>
      %336 = arith.addf %331, %335 : vector<1x256xf32>
      %c80_127 = arith.constant 80 : index
      %337 = memref.load %arg2[%c80_127] : memref<98xf32, #tpu.memory_space<smem>>
      %c1_128 = arith.constant 1 : index
      %c144_129 = arith.constant 144 : index
      %338 = vector.load %arg7[%c1_128, %c144_129] : memref<2x512xf32, #tpu.memory_space<vmem>>, vector<1x256xf32>
      %339 = vector.broadcast %337 : f32 to vector<1x256xf32>
      %340 = arith.mulf %339, %338 : vector<1x256xf32>
      %341 = arith.addf %336, %340 : vector<1x256xf32>
      %c87 = arith.constant 87 : index
      %342 = memref.load %arg2[%c87] : memref<98xf32, #tpu.memory_space<smem>>
      %c1_130 = arith.constant 1 : index
      %c160_131 = arith.constant 160 : index
      %343 = vector.load %arg7[%c1_130, %c160_131] : memref<2x512xf32, #tpu.memory_space<vmem>>, vector<1x256xf32>
      %344 = vector.broadcast %342 : f32 to vector<1x256xf32>
      %345 = arith.mulf %344, %343 : vector<1x256xf32>
      %346 = arith.addf %341, %345 : vector<1x256xf32>
      %c94_132 = arith.constant 94 : index
      %347 = memref.load %arg2[%c94_132] : memref<98xf32, #tpu.memory_space<smem>>
      %c1_133 = arith.constant 1 : index
      %c176_134 = arith.constant 176 : index
      %348 = vector.load %arg7[%c1_133, %c176_134] : memref<2x512xf32, #tpu.memory_space<vmem>>, vector<1x256xf32>
      %349 = vector.broadcast %347 : f32 to vector<1x256xf32>
      %350 = arith.mulf %349, %348 : vector<1x256xf32>
      %351 = arith.addf %346, %350 : vector<1x256xf32>
      %352 = arith.addf %280, %351 : vector<1x256xf32>
      %cst_135 = arith.constant 0.000000e+00 : f32
      %353 = vector.broadcast %cst_135 : f32 to vector<1x256xf32>
      %c4 = arith.constant 4 : index
      %354 = memref.load %arg2[%c4] : memref<98xf32, #tpu.memory_space<smem>>
      %c0_136 = arith.constant 0 : index
      %c81 = arith.constant 81 : index
      %355 = vector.load %arg7[%c0_136, %c81] : memref<2x512xf32, #tpu.memory_space<vmem>>, vector<1x256xf32>
      %356 = vector.broadcast %354 : f32 to vector<1x256xf32>
      %357 = arith.mulf %356, %355 : vector<1x256xf32>
      %358 = arith.addf %353, %357 : vector<1x256xf32>
      %c11 = arith.constant 11 : index
      %359 = memref.load %arg2[%c11] : memref<98xf32, #tpu.memory_space<smem>>
      %c0_137 = arith.constant 0 : index
      %c97 = arith.constant 97 : index
      %360 = vector.load %arg7[%c0_137, %c97] : memref<2x512xf32, #tpu.memory_space<vmem>>, vector<1x256xf32>
      %361 = vector.broadcast %359 : f32 to vector<1x256xf32>
      %362 = arith.mulf %361, %360 : vector<1x256xf32>
      %363 = arith.addf %358, %362 : vector<1x256xf32>
      %c18 = arith.constant 18 : index
      %364 = memref.load %arg2[%c18] : memref<98xf32, #tpu.memory_space<smem>>
      %c0_138 = arith.constant 0 : index
      %c113 = arith.constant 113 : index
      %365 = vector.load %arg7[%c0_138, %c113] : memref<2x512xf32, #tpu.memory_space<vmem>>, vector<1x256xf32>
      %366 = vector.broadcast %364 : f32 to vector<1x256xf32>
      %367 = arith.mulf %366, %365 : vector<1x256xf32>
      %368 = arith.addf %363, %367 : vector<1x256xf32>
      %c25 = arith.constant 25 : index
      %369 = memref.load %arg2[%c25] : memref<98xf32, #tpu.memory_space<smem>>
      %c0_139 = arith.constant 0 : index
      %c129 = arith.constant 129 : index
      %370 = vector.load %arg7[%c0_139, %c129] : memref<2x512xf32, #tpu.memory_space<vmem>>, vector<1x256xf32>
      %371 = vector.broadcast %369 : f32 to vector<1x256xf32>
      %372 = arith.mulf %371, %370 : vector<1x256xf32>
      %373 = arith.addf %368, %372 : vector<1x256xf32>
      %c32 = arith.constant 32 : index
      %374 = memref.load %arg2[%c32] : memref<98xf32, #tpu.memory_space<smem>>
      %c0_140 = arith.constant 0 : index
      %c145 = arith.constant 145 : index
      %375 = vector.load %arg7[%c0_140, %c145] : memref<2x512xf32, #tpu.memory_space<vmem>>, vector<1x256xf32>
      %376 = vector.broadcast %374 : f32 to vector<1x256xf32>
      %377 = arith.mulf %376, %375 : vector<1x256xf32>
      %378 = arith.addf %373, %377 : vector<1x256xf32>
      %c39 = arith.constant 39 : index
      %379 = memref.load %arg2[%c39] : memref<98xf32, #tpu.memory_space<smem>>
      %c0_141 = arith.constant 0 : index
      %c161 = arith.constant 161 : index
      %380 = vector.load %arg7[%c0_141, %c161] : memref<2x512xf32, #tpu.memory_space<vmem>>, vector<1x256xf32>
      %381 = vector.broadcast %379 : f32 to vector<1x256xf32>
      %382 = arith.mulf %381, %380 : vector<1x256xf32>
      %383 = arith.addf %378, %382 : vector<1x256xf32>
      %c46 = arith.constant 46 : index
      %384 = memref.load %arg2[%c46] : memref<98xf32, #tpu.memory_space<smem>>
      %c0_142 = arith.constant 0 : index
      %c177 = arith.constant 177 : index
      %385 = vector.load %arg7[%c0_142, %c177] : memref<2x512xf32, #tpu.memory_space<vmem>>, vector<1x256xf32>
      %386 = vector.broadcast %384 : f32 to vector<1x256xf32>
      %387 = arith.mulf %386, %385 : vector<1x256xf32>
      %388 = arith.addf %383, %387 : vector<1x256xf32>
      %c53 = arith.constant 53 : index
      %389 = memref.load %arg2[%c53] : memref<98xf32, #tpu.memory_space<smem>>
      %c1_143 = arith.constant 1 : index
      %c81_144 = arith.constant 81 : index
      %390 = vector.load %arg7[%c1_143, %c81_144] : memref<2x512xf32, #tpu.memory_space<vmem>>, vector<1x256xf32>
      %391 = vector.broadcast %389 : f32 to vector<1x256xf32>
      %392 = arith.mulf %391, %390 : vector<1x256xf32>
      %393 = arith.addf %388, %392 : vector<1x256xf32>
      %c60 = arith.constant 60 : index
      %394 = memref.load %arg2[%c60] : memref<98xf32, #tpu.memory_space<smem>>
      %c1_145 = arith.constant 1 : index
      %c97_146 = arith.constant 97 : index
      %395 = vector.load %arg7[%c1_145, %c97_146] : memref<2x512xf32, #tpu.memory_space<vmem>>, vector<1x256xf32>
      %396 = vector.broadcast %394 : f32 to vector<1x256xf32>
      %397 = arith.mulf %396, %395 : vector<1x256xf32>
      %398 = arith.addf %393, %397 : vector<1x256xf32>
      %c67 = arith.constant 67 : index
      %399 = memref.load %arg2[%c67] : memref<98xf32, #tpu.memory_space<smem>>
      %c1_147 = arith.constant 1 : index
      %c113_148 = arith.constant 113 : index
      %400 = vector.load %arg7[%c1_147, %c113_148] : memref<2x512xf32, #tpu.memory_space<vmem>>, vector<1x256xf32>
      %401 = vector.broadcast %399 : f32 to vector<1x256xf32>
      %402 = arith.mulf %401, %400 : vector<1x256xf32>
      %403 = arith.addf %398, %402 : vector<1x256xf32>
      %c74 = arith.constant 74 : index
      %404 = memref.load %arg2[%c74] : memref<98xf32, #tpu.memory_space<smem>>
      %c1_149 = arith.constant 1 : index
      %c129_150 = arith.constant 129 : index
      %405 = vector.load %arg7[%c1_149, %c129_150] : memref<2x512xf32, #tpu.memory_space<vmem>>, vector<1x256xf32>
      %406 = vector.broadcast %404 : f32 to vector<1x256xf32>
      %407 = arith.mulf %406, %405 : vector<1x256xf32>
      %408 = arith.addf %403, %407 : vector<1x256xf32>
      %c81_151 = arith.constant 81 : index
      %409 = memref.load %arg2[%c81_151] : memref<98xf32, #tpu.memory_space<smem>>
      %c1_152 = arith.constant 1 : index
      %c145_153 = arith.constant 145 : index
      %410 = vector.load %arg7[%c1_152, %c145_153] : memref<2x512xf32, #tpu.memory_space<vmem>>, vector<1x256xf32>
      %411 = vector.broadcast %409 : f32 to vector<1x256xf32>
      %412 = arith.mulf %411, %410 : vector<1x256xf32>
      %413 = arith.addf %408, %412 : vector<1x256xf32>
      %c88 = arith.constant 88 : index
      %414 = memref.load %arg2[%c88] : memref<98xf32, #tpu.memory_space<smem>>
      %c1_154 = arith.constant 1 : index
      %c161_155 = arith.constant 161 : index
      %415 = vector.load %arg7[%c1_154, %c161_155] : memref<2x512xf32, #tpu.memory_space<vmem>>, vector<1x256xf32>
      %416 = vector.broadcast %414 : f32 to vector<1x256xf32>
      %417 = arith.mulf %416, %415 : vector<1x256xf32>
      %418 = arith.addf %413, %417 : vector<1x256xf32>
      %c95_156 = arith.constant 95 : index
      %419 = memref.load %arg2[%c95_156] : memref<98xf32, #tpu.memory_space<smem>>
      %c1_157 = arith.constant 1 : index
      %c177_158 = arith.constant 177 : index
      %420 = vector.load %arg7[%c1_157, %c177_158] : memref<2x512xf32, #tpu.memory_space<vmem>>, vector<1x256xf32>
      %421 = vector.broadcast %419 : f32 to vector<1x256xf32>
      %422 = arith.mulf %421, %420 : vector<1x256xf32>
      %423 = arith.addf %418, %422 : vector<1x256xf32>
      %cst_159 = arith.constant 0.000000e+00 : f32
      %424 = vector.broadcast %cst_159 : f32 to vector<1x256xf32>
      %425 = arith.select %43, %423, %424 : vector<1x256xi1>, vector<1x256xf32>
      %426 = arith.addf %352, %425 : vector<1x256xf32>
      %cst_160 = arith.constant 0.000000e+00 : f32
      %427 = vector.broadcast %cst_160 : f32 to vector<1x256xf32>
      %c5 = arith.constant 5 : index
      %428 = memref.load %arg2[%c5] : memref<98xf32, #tpu.memory_space<smem>>
      %c0_161 = arith.constant 0 : index
      %c82 = arith.constant 82 : index
      %429 = vector.load %arg7[%c0_161, %c82] : memref<2x512xf32, #tpu.memory_space<vmem>>, vector<1x256xf32>
      %430 = vector.broadcast %428 : f32 to vector<1x256xf32>
      %431 = arith.mulf %430, %429 : vector<1x256xf32>
      %432 = arith.addf %427, %431 : vector<1x256xf32>
      %c12 = arith.constant 12 : index
      %433 = memref.load %arg2[%c12] : memref<98xf32, #tpu.memory_space<smem>>
      %c0_162 = arith.constant 0 : index
      %c98 = arith.constant 98 : index
      %434 = vector.load %arg7[%c0_162, %c98] : memref<2x512xf32, #tpu.memory_space<vmem>>, vector<1x256xf32>
      %435 = vector.broadcast %433 : f32 to vector<1x256xf32>
      %436 = arith.mulf %435, %434 : vector<1x256xf32>
      %437 = arith.addf %432, %436 : vector<1x256xf32>
      %c19 = arith.constant 19 : index
      %438 = memref.load %arg2[%c19] : memref<98xf32, #tpu.memory_space<smem>>
      %c0_163 = arith.constant 0 : index
      %c114 = arith.constant 114 : index
      %439 = vector.load %arg7[%c0_163, %c114] : memref<2x512xf32, #tpu.memory_space<vmem>>, vector<1x256xf32>
      %440 = vector.broadcast %438 : f32 to vector<1x256xf32>
      %441 = arith.mulf %440, %439 : vector<1x256xf32>
      %442 = arith.addf %437, %441 : vector<1x256xf32>
      %c26 = arith.constant 26 : index
      %443 = memref.load %arg2[%c26] : memref<98xf32, #tpu.memory_space<smem>>
      %c0_164 = arith.constant 0 : index
      %c130 = arith.constant 130 : index
      %444 = vector.load %arg7[%c0_164, %c130] : memref<2x512xf32, #tpu.memory_space<vmem>>, vector<1x256xf32>
      %445 = vector.broadcast %443 : f32 to vector<1x256xf32>
      %446 = arith.mulf %445, %444 : vector<1x256xf32>
      %447 = arith.addf %442, %446 : vector<1x256xf32>
      %c33 = arith.constant 33 : index
      %448 = memref.load %arg2[%c33] : memref<98xf32, #tpu.memory_space<smem>>
      %c0_165 = arith.constant 0 : index
      %c146 = arith.constant 146 : index
      %449 = vector.load %arg7[%c0_165, %c146] : memref<2x512xf32, #tpu.memory_space<vmem>>, vector<1x256xf32>
      %450 = vector.broadcast %448 : f32 to vector<1x256xf32>
      %451 = arith.mulf %450, %449 : vector<1x256xf32>
      %452 = arith.addf %447, %451 : vector<1x256xf32>
      %c40 = arith.constant 40 : index
      %453 = memref.load %arg2[%c40] : memref<98xf32, #tpu.memory_space<smem>>
      %c0_166 = arith.constant 0 : index
      %c162 = arith.constant 162 : index
      %454 = vector.load %arg7[%c0_166, %c162] : memref<2x512xf32, #tpu.memory_space<vmem>>, vector<1x256xf32>
      %455 = vector.broadcast %453 : f32 to vector<1x256xf32>
      %456 = arith.mulf %455, %454 : vector<1x256xf32>
      %457 = arith.addf %452, %456 : vector<1x256xf32>
      %c47 = arith.constant 47 : index
      %458 = memref.load %arg2[%c47] : memref<98xf32, #tpu.memory_space<smem>>
      %c0_167 = arith.constant 0 : index
      %c178 = arith.constant 178 : index
      %459 = vector.load %arg7[%c0_167, %c178] : memref<2x512xf32, #tpu.memory_space<vmem>>, vector<1x256xf32>
      %460 = vector.broadcast %458 : f32 to vector<1x256xf32>
      %461 = arith.mulf %460, %459 : vector<1x256xf32>
      %462 = arith.addf %457, %461 : vector<1x256xf32>
      %c54 = arith.constant 54 : index
      %463 = memref.load %arg2[%c54] : memref<98xf32, #tpu.memory_space<smem>>
      %c1_168 = arith.constant 1 : index
      %c82_169 = arith.constant 82 : index
      %464 = vector.load %arg7[%c1_168, %c82_169] : memref<2x512xf32, #tpu.memory_space<vmem>>, vector<1x256xf32>
      %465 = vector.broadcast %463 : f32 to vector<1x256xf32>
      %466 = arith.mulf %465, %464 : vector<1x256xf32>
      %467 = arith.addf %462, %466 : vector<1x256xf32>
      %c61 = arith.constant 61 : index
      %468 = memref.load %arg2[%c61] : memref<98xf32, #tpu.memory_space<smem>>
      %c1_170 = arith.constant 1 : index
      %c98_171 = arith.constant 98 : index
      %469 = vector.load %arg7[%c1_170, %c98_171] : memref<2x512xf32, #tpu.memory_space<vmem>>, vector<1x256xf32>
      %470 = vector.broadcast %468 : f32 to vector<1x256xf32>
      %471 = arith.mulf %470, %469 : vector<1x256xf32>
      %472 = arith.addf %467, %471 : vector<1x256xf32>
      %c68 = arith.constant 68 : index
      %473 = memref.load %arg2[%c68] : memref<98xf32, #tpu.memory_space<smem>>
      %c1_172 = arith.constant 1 : index
      %c114_173 = arith.constant 114 : index
      %474 = vector.load %arg7[%c1_172, %c114_173] : memref<2x512xf32, #tpu.memory_space<vmem>>, vector<1x256xf32>
      %475 = vector.broadcast %473 : f32 to vector<1x256xf32>
      %476 = arith.mulf %475, %474 : vector<1x256xf32>
      %477 = arith.addf %472, %476 : vector<1x256xf32>
      %c75 = arith.constant 75 : index
      %478 = memref.load %arg2[%c75] : memref<98xf32, #tpu.memory_space<smem>>
      %c1_174 = arith.constant 1 : index
      %c130_175 = arith.constant 130 : index
      %479 = vector.load %arg7[%c1_174, %c130_175] : memref<2x512xf32, #tpu.memory_space<vmem>>, vector<1x256xf32>
      %480 = vector.broadcast %478 : f32 to vector<1x256xf32>
      %481 = arith.mulf %480, %479 : vector<1x256xf32>
      %482 = arith.addf %477, %481 : vector<1x256xf32>
      %c82_176 = arith.constant 82 : index
      %483 = memref.load %arg2[%c82_176] : memref<98xf32, #tpu.memory_space<smem>>
      %c1_177 = arith.constant 1 : index
      %c146_178 = arith.constant 146 : index
      %484 = vector.load %arg7[%c1_177, %c146_178] : memref<2x512xf32, #tpu.memory_space<vmem>>, vector<1x256xf32>
      %485 = vector.broadcast %483 : f32 to vector<1x256xf32>
      %486 = arith.mulf %485, %484 : vector<1x256xf32>
      %487 = arith.addf %482, %486 : vector<1x256xf32>
      %c89 = arith.constant 89 : index
      %488 = memref.load %arg2[%c89] : memref<98xf32, #tpu.memory_space<smem>>
      %c1_179 = arith.constant 1 : index
      %c162_180 = arith.constant 162 : index
      %489 = vector.load %arg7[%c1_179, %c162_180] : memref<2x512xf32, #tpu.memory_space<vmem>>, vector<1x256xf32>
      %490 = vector.broadcast %488 : f32 to vector<1x256xf32>
      %491 = arith.mulf %490, %489 : vector<1x256xf32>
      %492 = arith.addf %487, %491 : vector<1x256xf32>
      %c96_181 = arith.constant 96 : index
      %493 = memref.load %arg2[%c96_181] : memref<98xf32, #tpu.memory_space<smem>>
      %c1_182 = arith.constant 1 : index
      %c178_183 = arith.constant 178 : index
      %494 = vector.load %arg7[%c1_182, %c178_183] : memref<2x512xf32, #tpu.memory_space<vmem>>, vector<1x256xf32>
      %495 = vector.broadcast %493 : f32 to vector<1x256xf32>
      %496 = arith.mulf %495, %494 : vector<1x256xf32>
      %497 = arith.addf %492, %496 : vector<1x256xf32>
      %cst_184 = arith.constant 0.000000e+00 : f32
      %498 = vector.broadcast %cst_184 : f32 to vector<1x256xf32>
      %499 = arith.select %45, %497, %498 : vector<1x256xi1>, vector<1x256xf32>
      %500 = arith.addf %426, %499 : vector<1x256xf32>
      %cst_185 = arith.constant 0.000000e+00 : f32
      %501 = vector.broadcast %cst_185 : f32 to vector<1x256xf32>
      %c6 = arith.constant 6 : index
      %502 = memref.load %arg2[%c6] : memref<98xf32, #tpu.memory_space<smem>>
      %c0_186 = arith.constant 0 : index
      %c83 = arith.constant 83 : index
      %503 = vector.load %arg7[%c0_186, %c83] : memref<2x512xf32, #tpu.memory_space<vmem>>, vector<1x256xf32>
      %504 = vector.broadcast %502 : f32 to vector<1x256xf32>
      %505 = arith.mulf %504, %503 : vector<1x256xf32>
      %506 = arith.addf %501, %505 : vector<1x256xf32>
      %c13 = arith.constant 13 : index
      %507 = memref.load %arg2[%c13] : memref<98xf32, #tpu.memory_space<smem>>
      %c0_187 = arith.constant 0 : index
      %c99 = arith.constant 99 : index
      %508 = vector.load %arg7[%c0_187, %c99] : memref<2x512xf32, #tpu.memory_space<vmem>>, vector<1x256xf32>
      %509 = vector.broadcast %507 : f32 to vector<1x256xf32>
      %510 = arith.mulf %509, %508 : vector<1x256xf32>
      %511 = arith.addf %506, %510 : vector<1x256xf32>
      %c20 = arith.constant 20 : index
      %512 = memref.load %arg2[%c20] : memref<98xf32, #tpu.memory_space<smem>>
      %c0_188 = arith.constant 0 : index
      %c115 = arith.constant 115 : index
      %513 = vector.load %arg7[%c0_188, %c115] : memref<2x512xf32, #tpu.memory_space<vmem>>, vector<1x256xf32>
      %514 = vector.broadcast %512 : f32 to vector<1x256xf32>
      %515 = arith.mulf %514, %513 : vector<1x256xf32>
      %516 = arith.addf %511, %515 : vector<1x256xf32>
      %c27 = arith.constant 27 : index
      %517 = memref.load %arg2[%c27] : memref<98xf32, #tpu.memory_space<smem>>
      %c0_189 = arith.constant 0 : index
      %c131 = arith.constant 131 : index
      %518 = vector.load %arg7[%c0_189, %c131] : memref<2x512xf32, #tpu.memory_space<vmem>>, vector<1x256xf32>
      %519 = vector.broadcast %517 : f32 to vector<1x256xf32>
      %520 = arith.mulf %519, %518 : vector<1x256xf32>
      %521 = arith.addf %516, %520 : vector<1x256xf32>
      %c34 = arith.constant 34 : index
      %522 = memref.load %arg2[%c34] : memref<98xf32, #tpu.memory_space<smem>>
      %c0_190 = arith.constant 0 : index
      %c147 = arith.constant 147 : index
      %523 = vector.load %arg7[%c0_190, %c147] : memref<2x512xf32, #tpu.memory_space<vmem>>, vector<1x256xf32>
      %524 = vector.broadcast %522 : f32 to vector<1x256xf32>
      %525 = arith.mulf %524, %523 : vector<1x256xf32>
      %526 = arith.addf %521, %525 : vector<1x256xf32>
      %c41 = arith.constant 41 : index
      %527 = memref.load %arg2[%c41] : memref<98xf32, #tpu.memory_space<smem>>
      %c0_191 = arith.constant 0 : index
      %c163 = arith.constant 163 : index
      %528 = vector.load %arg7[%c0_191, %c163] : memref<2x512xf32, #tpu.memory_space<vmem>>, vector<1x256xf32>
      %529 = vector.broadcast %527 : f32 to vector<1x256xf32>
      %530 = arith.mulf %529, %528 : vector<1x256xf32>
      %531 = arith.addf %526, %530 : vector<1x256xf32>
      %c48 = arith.constant 48 : index
      %532 = memref.load %arg2[%c48] : memref<98xf32, #tpu.memory_space<smem>>
      %c0_192 = arith.constant 0 : index
      %c179 = arith.constant 179 : index
      %533 = vector.load %arg7[%c0_192, %c179] : memref<2x512xf32, #tpu.memory_space<vmem>>, vector<1x256xf32>
      %534 = vector.broadcast %532 : f32 to vector<1x256xf32>
      %535 = arith.mulf %534, %533 : vector<1x256xf32>
      %536 = arith.addf %531, %535 : vector<1x256xf32>
      %c55 = arith.constant 55 : index
      %537 = memref.load %arg2[%c55] : memref<98xf32, #tpu.memory_space<smem>>
      %c1_193 = arith.constant 1 : index
      %c83_194 = arith.constant 83 : index
      %538 = vector.load %arg7[%c1_193, %c83_194] : memref<2x512xf32, #tpu.memory_space<vmem>>, vector<1x256xf32>
      %539 = vector.broadcast %537 : f32 to vector<1x256xf32>
      %540 = arith.mulf %539, %538 : vector<1x256xf32>
      %541 = arith.addf %536, %540 : vector<1x256xf32>
      %c62 = arith.constant 62 : index
      %542 = memref.load %arg2[%c62] : memref<98xf32, #tpu.memory_space<smem>>
      %c1_195 = arith.constant 1 : index
      %c99_196 = arith.constant 99 : index
      %543 = vector.load %arg7[%c1_195, %c99_196] : memref<2x512xf32, #tpu.memory_space<vmem>>, vector<1x256xf32>
      %544 = vector.broadcast %542 : f32 to vector<1x256xf32>
      %545 = arith.mulf %544, %543 : vector<1x256xf32>
      %546 = arith.addf %541, %545 : vector<1x256xf32>
      %c69 = arith.constant 69 : index
      %547 = memref.load %arg2[%c69] : memref<98xf32, #tpu.memory_space<smem>>
      %c1_197 = arith.constant 1 : index
      %c115_198 = arith.constant 115 : index
      %548 = vector.load %arg7[%c1_197, %c115_198] : memref<2x512xf32, #tpu.memory_space<vmem>>, vector<1x256xf32>
      %549 = vector.broadcast %547 : f32 to vector<1x256xf32>
      %550 = arith.mulf %549, %548 : vector<1x256xf32>
      %551 = arith.addf %546, %550 : vector<1x256xf32>
      %c76 = arith.constant 76 : index
      %552 = memref.load %arg2[%c76] : memref<98xf32, #tpu.memory_space<smem>>
      %c1_199 = arith.constant 1 : index
      %c131_200 = arith.constant 131 : index
      %553 = vector.load %arg7[%c1_199, %c131_200] : memref<2x512xf32, #tpu.memory_space<vmem>>, vector<1x256xf32>
      %554 = vector.broadcast %552 : f32 to vector<1x256xf32>
      %555 = arith.mulf %554, %553 : vector<1x256xf32>
      %556 = arith.addf %551, %555 : vector<1x256xf32>
      %c83_201 = arith.constant 83 : index
      %557 = memref.load %arg2[%c83_201] : memref<98xf32, #tpu.memory_space<smem>>
      %c1_202 = arith.constant 1 : index
      %c147_203 = arith.constant 147 : index
      %558 = vector.load %arg7[%c1_202, %c147_203] : memref<2x512xf32, #tpu.memory_space<vmem>>, vector<1x256xf32>
      %559 = vector.broadcast %557 : f32 to vector<1x256xf32>
      %560 = arith.mulf %559, %558 : vector<1x256xf32>
      %561 = arith.addf %556, %560 : vector<1x256xf32>
      %c90 = arith.constant 90 : index
      %562 = memref.load %arg2[%c90] : memref<98xf32, #tpu.memory_space<smem>>
      %c1_204 = arith.constant 1 : index
      %c163_205 = arith.constant 163 : index
      %563 = vector.load %arg7[%c1_204, %c163_205] : memref<2x512xf32, #tpu.memory_space<vmem>>, vector<1x256xf32>
      %564 = vector.broadcast %562 : f32 to vector<1x256xf32>
      %565 = arith.mulf %564, %563 : vector<1x256xf32>
      %566 = arith.addf %561, %565 : vector<1x256xf32>
      %c97_206 = arith.constant 97 : index
      %567 = memref.load %arg2[%c97_206] : memref<98xf32, #tpu.memory_space<smem>>
      %c1_207 = arith.constant 1 : index
      %c179_208 = arith.constant 179 : index
      %568 = vector.load %arg7[%c1_207, %c179_208] : memref<2x512xf32, #tpu.memory_space<vmem>>, vector<1x256xf32>
      %569 = vector.broadcast %567 : f32 to vector<1x256xf32>
      %570 = arith.mulf %569, %568 : vector<1x256xf32>
      %571 = arith.addf %566, %570 : vector<1x256xf32>
      %cst_209 = arith.constant 0.000000e+00 : f32
      %572 = vector.broadcast %cst_209 : f32 to vector<1x256xf32>
      %573 = arith.select %47, %571, %572 : vector<1x256xi1>, vector<1x256xf32>
      %574 = arith.addf %500, %573 : vector<1x256xf32>
      %575 = arith.negf %574 : vector<1x256xf32>
      %576 = math.exp %575 : vector<1x256xf32>
      %cst_210 = arith.constant 1.000000e+00 : f32
      %577 = vector.broadcast %cst_210 : f32 to vector<1x256xf32>
      %578 = arith.addf %577, %576 : vector<1x256xf32>
      %579 = arith.divf %577, %578 : vector<1x256xf32>
      %580 = arith.index_cast %c0_i32_26 : i32 to index
      %c0_211 = arith.constant 0 : index
      %c0_212 = arith.constant 0 : index
      %581 = vector.load %arg4[%580, %c0_211, %c0_212] : memref<1x1x256xf32, #tpu.memory_space<vmem>>, vector<1x1x256xf32>
      %582 = vector.shape_cast %581 : vector<1x1x256xf32> to vector<1x256xf32>
      %583 = vector.shape_cast %579 : vector<1x256xf32> to vector<1x1x256xf32>
      tpu.vector_store %arg4[%580, %c0_211, %c0_212], %583 {strides = array<i32>} : memref<1x1x256xf32, #tpu.memory_space<vmem>>, vector<1x1x256xf32>,
      %c1_i32_213 = arith.constant 1 : i32
    } else {
    }
    return
  }
  func.func @transform_0(%arg0: i32, %arg1: i32, %arg2: memref<98xf32, #tpu.memory_space<smem>>) -> (i32, i32, i32) {
    %c0_i32 = arith.constant 0 : i32
    %c0_i32_0 = arith.constant 0 : i32
    return %arg0, %arg1, %c0_i32 : i32, i32, i32
  }
  func.func @transform_1(%arg0: i32, %arg1: i32, %arg2: memref<98xf32, #tpu.memory_space<smem>>) -> (i32, i32, i32) {
    %c0_i32 = arith.constant 0 : i32
    %c0_i32_0 = arith.constant 0 : i32
    %c0_i32_1 = arith.constant 0 : i32
    return %arg0, %c0_i32, %c0_i32_0 : i32, i32, i32
  }
}

</mosaic_0001>

<llo_original>
// kernel: tpu_custom_call.1
$region0: #{tpu_custom_call.1}
  #allocation0 [shape = 'u32[]', space=smem, size = 0x4, offset = 0x4, fixed_abs, tag = 'smem constant byte address 0x4 - core index']
  #allocation1 [shape = 'u32[72,128]{1,0:T(1,128)}', space=vmem, size = 0x9000, scoped, tag = 'internal scratch']
  #allocation2 [shape = 'f32[1,1,256]{2,1,0:T(1,128)}', space=vmem, size = 0x400, scoped, tag = 'scratch operand']
  #allocation3 [shape = 'f32[1,1,256]{2,1,0:T(1,128)}', space=vmem, size = 0x400, scoped, tag = 'scratch operand']
  #allocation4 [shape = 'f32[2,512]{1,0:T(2,128)}', space=vmem, size = 0x1000, scoped, tag = 'scratch operand']
  #allocation5 [shape = 's32[1]{0}', space=sflag, size = 0x4, scoped, tag = 'scoped memory for tpu_custom_call.1']
  #allocation6 [shape = 'u8[512]{0}', space=smem, size = 0x200, scoped, tag = 'prefetched SMEM operand 0']
  %s0 = inlined_call_operand.hbm [shape: f32[98], index: 0, kind: input, shape index: {}]
  %s1 = inlined_call_operand.hbm [shape: f32[2,4,256], index: 1, kind: input, shape index: {}]
  %s2 = inlined_call_operand.hbm [shape: f32[2,1,256], index: 2, kind: output, shape index: {}]
  %s3 = sld [smem:[#allocation0]]
  $region49: #{tpu_custom_call.1} parent=0
    _
  %s5 = ssub.s32 1, %s3
  %s6 = scalar_select 0, %s5, %s3
  %s8 = sshll.u32 %s0, 4
  %s9 = int_to_ptr.hbm [resolvable:$true] %s8
  %11 = dma.hbm_to_smem %s9, 16, [#allocation6], [#allocation5]
  %13 = dma.done [#allocation5], 16
  %14 = sfence
  $region1: #{tpu_custom_call.1} parent=0
    #allocation7 [shape = 'u8[8192]{0}', space=vmem, size = 0x2000, scoped, tag = 'input window, operand 1']
    #allocation8 [shape = 's32[2]{0}', space=sflag, size = 0x8, scoped, tag = 'scoped memory for tpu_custom_call.1']
    #allocation9 [shape = 's32[2]{0}', space=sflag, size = 0x8, scoped, tag = 'scoped memory for tpu_custom_call.1']
    #allocation10 [shape = 'u8[2048]{0}', space=vmem, size = 0x800, scoped, tag = 'output window, operand 0']
    %15 = vsyncpa [#allocation8], 0
    %s16 = scalar_lea.sflag [#allocation8], 1
    %17 = vsyncpa %s16, 0
    %18 = vsyncpa [#allocation9], 0
    %s19 = scalar_lea.sflag [#allocation9], 1
    %20 = vsyncpa %s19, 0
    loop: start=0, step=1, limit=4
    $region2: #{tpu_custom_call.1} parent=1 // loop_pre_header
      _
    $region3: #{tpu_custom_call.1} parent=1 // loop_header
      %s22 = sphi 0, %s26
      %p23 = scmp.ge.s32.totalorder %s22, 4
      %s29 = sphi 0, %s41
      %s30 = sphi 0, %s37
      %s31 = sphi 0, %s29
      %s32 = sphi 0, %s30
      %s33 = sphi 0, %s31
      %s34 = sphi 0, %s32
      %s46 = sphi 0, %s48
      %s49 = sphi 0, %s46
      %s50 = sphi 0, %s49
      %s66 = sphi 0, %s50
      %s72 = sphi 0, %s74
      %s75 = sphi 0, %s72
      %s76 = sphi 0, %s75
      %s92 = sphi 0, %s76
    $region4: #{tpu_custom_call.1} parent=1 // loop_header_branch
      %25 = sbr.rel (%p23) target = $region8
    $region5: #{tpu_custom_call.1} parent=1 // loop_body
      %s27 = ssub.s32 %s22, 1
      %s28 = ssub.s32 %s22, 2
      %s35 = sadd.s32 1, %s30
      %p36 = scmp.ge.s32.totalorder %s35, 1
      %s37 = scalar_select %p36, 0, %s35
      %s38 = sadd.s32 1, %s29
      %s39 = scalar_select %p36, %s38, %s29
      %p40 = scmp.ge.s32.totalorder %s39, 2
      %s41 = scalar_select %p40, 0, %s39
      %s42 = ssub.s32 %s29, %s41
      %s43 = ssub.s32 %s30, %s37
      %s44 = sor.u32 %s42, %s43
      %p45 = scmp.eq.s32.totalorder %s44, 0
      %s47 = sadd.s32 %s46, 1
      %s48 = scalar_select %p45, %s46, %s47
      %p51 = pneg %p45
      %p52 = scmp.eq.s32.totalorder %s22, 1
      %p53 = por %p51, %p52
      %p54 = scmp.ne.s32.totalorder %s46, %s49
      %p55 = scmp.eq.s32.totalorder %s22, 0
      %p56 = por %p54, %p55
      %p57 = scmp.ne.s32.totalorder %s46, %s49
      %p58 = scmp.eq.s32.totalorder %s27, 1
      %p59 = por %p57, %p58
      %p60 = scmp.ne.s32.totalorder %s49, %s50
      %p61 = scmp.eq.s32.totalorder %s27, 0
      %p62 = por %p60, %p61
      %p63 = scmp.ne.s32.totalorder %s49, %s50
      %p64 = scmp.eq.s32.totalorder %s28, 1
      %p65 = por %p63, %p64
      %p67 = scmp.ne.s32.totalorder %s50, %s66
      %p68 = scmp.eq.s32.totalorder %s28, 0
      %p69 = por %p67, %p68
      %s70 = ssub.s32 %s29, %s41
      %p71 = scmp.eq.s32.totalorder %s70, 0
      %s73 = sadd.s32 %s72, 1
      %s74 = scalar_select %p71, %s72, %s73
      %p77 = pneg %p71
      %p78 = scmp.eq.s32.totalorder %s22, 1
      %p79 = por %p77, %p78
      %p80 = scmp.ne.s32.totalorder %s72, %s75
      %p81 = scmp.eq.s32.totalorder %s22, 0
      %p82 = por %p80, %p81
      %p83 = scmp.ne.s32.totalorder %s72, %s75
      %p84 = scmp.eq.s32.totalorder %s27, 1
      %p85 = por %p83, %p84
      %p86 = scmp.ne.s32.totalorder %s75, %s76
      %p87 = scmp.eq.s32.totalorder %s27, 0
      %p88 = por %p86, %p87
      %p89 = scmp.ne.s32.totalorder %s75, %s76
      %p90 = scmp.eq.s32.totalorder %s28, 1
      %p91 = por %p89, %p90
      %p93 = scmp.ne.s32.totalorder %s76, %s92
      %p94 = scmp.eq.s32.totalorder %s28, 0
      %p95 = por %p93, %p94
      %p96 = scmp.le.s32.totalorder 1, %s22
      %p97 = scmp.lt.s32.totalorder %s22, 3
      %p98 = pnand %p96, %p97
      %p99 = pneg %p98
      // Predicated region
      $region9: #{tpu_custom_call.1} parent=5 // pred_check
        _
      $region10: #{tpu_custom_call.1} parent=5 // pred_check_branch
        %101 = sbr.rel (%p98) target = $region12
      $region11: #{tpu_custom_call.1} parent=5 // pred_region
        %s102 = ssub.s32 %s22, 1
      $region12: #{tpu_custom_call.1} parent=5 // pred_fallthru
        _
      %p103 = scmp.lt.s32.totalorder %s22, 2
      // Predicated region
      $region13: #{tpu_custom_call.1} parent=5 // pred_check
        %p104 = pneg %p103
      $region14: #{tpu_custom_call.1} parent=5 // pred_check_branch
        %106 = sbr.rel (%p104) target = $region16
      $region15: #{tpu_custom_call.1} parent=5 // pred_region
        // Predicated region
        $region17: #{tpu_custom_call.1} parent=15 // pred_check
          %p107 = pneg %p56
        $region18: #{tpu_custom_call.1} parent=15 // pred_check_branch
          %109 = sbr.rel (%p107) target = $region20
        $region19: #{tpu_custom_call.1} parent=15 // pred_region
          %s110 = sand.u32 %s46, 1
          %s111 = scalar_lea.sflag [#allocation8], %s110
          %s112 = sand.u32 %s46, 1
          %s113 = smul.addr %s112, 8
          %s114 = scalar_lea.vmem [#allocation7], %s113
          %116 = vsyncadd %s111, 0
          %s117 = smul.addr %s30, 2
          %s118 = smul.addr %s29, 2
          %s119 = sadd.s32 %s117, %s118
          %s120 = smul.addr %s119, 4
          %s121 = scalar_lea.hbm %s1, %s120
          %s123 = sshll.u32 %s121, 4
          %s124 = int_to_ptr.hbm [resolvable:$true] %s123
          %s125 = sshll.u32 %s114, 4
          %s126 = int_to_ptr.vmem [resolvable:$true] %s125
          %128 = dma.hbm_to_vmem [thread:$0]  %s124, 128, %s126, %s111
        $region20: #{tpu_custom_call.1} parent=15 // pred_fallthru
          _
      $region16: #{tpu_custom_call.1} parent=5 // pred_fallthru
        _
      %p129 = scmp.le.s32.totalorder 1, %s22
      %p130 = scmp.lt.s32.totalorder %s22, 3
      %p131 = pnand %p129, %p130
      %p132 = pneg %p131
      // Predicated region
      $region21: #{tpu_custom_call.1} parent=5 // pred_check
        _
      $region22: #{tpu_custom_call.1} parent=5 // pred_check_branch
        %134 = sbr.rel (%p131) target = $region24
      $region23: #{tpu_custom_call.1} parent=5 // pred_region
        %s135 = ssub.s32 %s22, 1
        %s136 = sand.u32 %s49, 1
        %s137 = scalar_lea.sflag [#allocation8], %s136
        %s138 = sand.u32 %s49, 1
        %s139 = smul.addr %s138, 8
        %s140 = scalar_lea.vmem [#allocation7], %s139
        // Predicated region
        $region25: #{tpu_custom_call.1} parent=23 // pred_check
          %p141 = pneg %p62
        $region26: #{tpu_custom_call.1} parent=23 // pred_check_branch
          %143 = sbr.rel (%p141) target = $region28
        $region27: #{tpu_custom_call.1} parent=23 // pred_region
          %145 = dma.done %s137, 128
        $region28: #{tpu_custom_call.1} parent=23 // pred_fallthru
          _
        %s146 = sand.u32 %s49, 1
        %s147 = scalar_lea.sflag [#allocation8], %s146
        %s148 = sand.u32 %s49, 1
        %s149 = smul.addr %s148, 8
        %s150 = scalar_lea.vmem [#allocation7], %s149
        %p151 = pneg %p62
        %p152 = pneg %p59
        %p153 = pneg %p88
        %p154 = pneg %p85
        %s155 = sand.u32 %s75, 1
        %s156 = scalar_lea.sflag [#allocation9], %s155
        %s157 = sand.u32 %s75, 1
        %s158 = smul.addr %s157, 2
        %s159 = scalar_lea.vmem [#allocation10], %s158
        %p160 = scmp.eq.s32.totalorder %s32, 0
        // Predicated region
        $region29: #{tpu_custom_call.1} parent=23 // pred_check
          %p161 = pneg %p160
        $region30: #{tpu_custom_call.1} parent=23 // pred_check_branch
          %163 = sbr.rel (%p161) target = $region32
        $region31: #{tpu_custom_call.1} parent=23 // pred_region
          %v164 = vlaneseq
          %vm165 = vcmp.ge.s32.totalorder %v164, 0
          %vm166 = vcmp.lt.s32.totalorder %v164, 256
          %vm167 = vmand %vm165, %vm166
          %168 = vst.msk [vmem:[#allocation2] sm:$0x3] %vm167, 0.0
          %169 = vst.msk [vmem:[#allocation3] sm:$0x3] %vm167, -inf
        $region32: #{tpu_custom_call.1} parent=23 // pred_fallthru
          _
        %v170 = vld [vmem:[%s140] sm:$0xff]
        %v171 = vld [vmem:[#allocation2] sm:$0x3]
        %173 = vst [vmem:[#allocation1] ss:$2 sm:$0xff] %v170
        %v174 = vld.sshfl [vmem:[#allocation1] sm:$0xff pattern:$0x75316420]
        %v175 = vld.sshfl [vmem:[#allocation1 + $0x8] sm:$0xff pattern:$0x75316420]
        %vm178 = vcmask 1043456
        %v179 = vsel %vm178, %v174, 0.0
        %v180 = vrot.slane %v179, 4
        %v181 = vadd.f32 %v179, %v180
        %v182 = vrot.slane %v181, 2
        %v183 = vadd.f32 %v181, %v182
        %v184 = vrot.slane %v183, 1
        %v185 = vadd.f32 %v183, %v184
        %v186 = vsel %vm178, %v175, 0.0
        %v187 = vrot.slane %v186, 4
        %v188 = vadd.f32 %v186, %v187
        %v189 = vrot.slane %v188, 2
        %v190 = vadd.f32 %v188, %v189
        %v191 = vrot.slane %v190, 1
        %v192 = vadd.f32 %v190, %v191
        %v195 = vrot.slane %v192, 7
        %vm196 = vcmask 1040384
        %v197 = vsel %vm196, %v185, %v195
        %v199 = vadd.f32 %v171, %v197
        %v200 = vlaneseq
        %vm201 = vcmp.ge.s32.totalorder %v200, 0
        %vm202 = vcmp.lt.s32.totalorder %v200, 256
        %vm203 = vmand %vm201, %vm202
        %204 = vst.msk [vmem:[#allocation2] sm:$0x3] %vm203, %v199
        %v205 = vld [vmem:[#allocation3] sm:$0x3]
        %206 = vst [vmem:[#allocation1] ss:$2 sm:$0xff] %v170
        %v207 = vld.sshfl [vmem:[#allocation1] sm:$0xff pattern:$0x75316420]
        %v208 = vld.sshfl [vmem:[#allocation1 + $0x8] sm:$0xff pattern:$0x75316420]
        %v211 = vsel %vm178, %v207, -inf
        %v212 = vrot.slane %v211, 4
        %v213 = vmax.f32 %v211, %v212
        %v214 = vrot.slane %v213, 2
        %v215 = vmax.f32 %v213, %v214
        %v216 = vrot.slane %v215, 1
        %v217 = vmax.f32 %v215, %v216
        %v218 = vsel %vm178, %v208, -inf
        %v219 = vrot.slane %v218, 4
        %v220 = vmax.f32 %v218, %v219
        %v221 = vrot.slane %v220, 2
        %v222 = vmax.f32 %v220, %v221
        %v223 = vrot.slane %v222, 1
        %v224 = vmax.f32 %v222, %v223
        %v227 = vrot.slane %v224, 7
        %v228 = vsel %vm196, %v217, %v227
        %v230 = vmax.f32 %v205, %v228
        %231 = vst.msk [vmem:[#allocation3] sm:$0x3] %vm203, %v230
        // Predicated region
        $region33: #{tpu_custom_call.1} parent=23 // pred_check
          %p232 = pneg %p160
        $region34: #{tpu_custom_call.1} parent=23 // pred_check_branch
          %234 = sbr.rel (%p232) target = $region36
        $region35: #{tpu_custom_call.1} parent=23 // pred_region
          %235 = vst [vmem:[#allocation4] sm:$0xff] 0.0
          %v236 = vlaneseq
          %v237 = vand.u32 %v236, 127
          %v238 = vadd.s32 %v237, 128
          %vm239 = vcmp.lt.s32.totalorder %v237, 0
          %v240 = vsub.s32 0, %v237
          %v241 = vsel %vm239, %v240, %v237
          %v242 = vshrl.u32 %v241, 4
          %v243 = vand.u32 %v241, 15
          %v244 = vsub.s32 0, %v243
          %v245 = vsel %vm239, %v244, %v243
          %vm246 = vcmp.lt.s32.totalorder %v238, 0
          %v247 = vsub.s32 0, %v238
          %v248 = vsel %vm246, %v247, %v238
          %v249 = vshrl.u32 %v248, 4
          %v250 = vand.u32 %v248, 15
          %v251 = vsub.s32 0, %v250
          %v252 = vsel %vm246, %v251, %v250
          %vm253 = vcmp.ne.s32.totalorder %v245, 0
          %vm254 = vcmp.ne.s32.totalorder %v252, 0
          %vm255 = vcmp.lt.s32.totalorder %v245, 0
          %vm256 = vcmp.lt.s32.totalorder %v252, 0
          %vm257 = vmand %vm255, %vm253
          %vm258 = vmand %vm256, %vm254
          %v259 = vadd.s32 %v245, 16
          %v260 = vadd.s32 %v252, 16
          %v261 = vsel %vm257, %v259, %v245
          %v262 = vsel %vm258, %v260, %v252
          %vm263 = vcmp.ge.s32.totalorder %v261, 3
          %vm264 = vcmp.ge.s32.totalorder %v262, 3
          %vm265 = vcmp.ge.s32.totalorder %v261, 2
          %vm266 = vcmp.ge.s32.totalorder %v262, 2
          %vm267 = vcmp.ge.s32.totalorder %v261, 1
          %vm268 = vcmp.ge.s32.totalorder %v262, 1
          %vm269 = vcmp.lt.s32.totalorder %v261, 15
          %vm270 = vcmp.lt.s32.totalorder %v262, 15
          %vm271 = vcmp.lt.s32.totalorder %v261, 14
          %vm272 = vcmp.lt.s32.totalorder %v262, 14
          %vm273 = vcmp.lt.s32.totalorder %v261, 13
          %vm274 = vcmp.lt.s32.totalorder %v262, 13
          %v275 = vld [vmem:[#allocation2] sm:$0x3]
          %v276 = vmul.f32 %v275, 0.25
          %s277 = scalar_lea.vmem [#allocation4], 2
          %278 = vst.msk [vmem:[%s277] ss:$2 sm:$0x3] %vm203, %v276
          %v279 = vld [vmem:[#allocation3] sm:$0x3]
          %s280 = scalar_lea.vmem [#allocation4], 3
          %281 = vst.msk [vmem:[%s280] ss:$2 sm:$0x3] %vm203, %v279
          %s282 = sld [smem:[#allocation6]]
          %v283 = vld [vmem:[#allocation4] ss:$2 sm:$0x7]
          %v284 = vstv %s282
          %v285 = vmul.f32 %v284, %v283
          %v286 = vadd.f32 %v285, 0.0
          %s287 = sld [smem:[#allocation6 + $0x7]]
          %v288 = vstv %s287
          %v289 = vmul.f32 %v288, %v283
          %291 = vrot.lane.b32.xlu0 %v289, 112
          %v292 = vpop.permute.xlu0 %291
          %v293 = vrot.slane %v292, 1
          %vm294 = vcmask 916480
          %v295 = vsel %vm294, %v292, %v293
          %v297 = vadd.f32 %v286, %v295
          %s298 = sld [smem:[#allocation6 + $0xe]]
          %v299 = vstv %s298
          %v300 = vmul.f32 %v299, %v283
          %302 = vrot.lane.b32.xlu0 %v300, 96
          %v303 = vpop.permute.xlu0 %302
          %v304 = vrot.slane %v303, 1
          %vm305 = vcmask 785408
          %v306 = vsel %vm305, %v303, %v304
          %v308 = vadd.f32 %v297, %v306
          %s309 = sld [smem:[#allocation6 + $0x15]]
          %v310 = vstv %s309
          %v311 = vmul.f32 %v310, %v283
          %313 = vrot.lane.b32.xlu0 %v311, 80
          %v314 = vpop.permute.xlu0 %313
          %v315 = vrot.slane %v314, 1
          %vm316 = vcmask 654336
          %v317 = vsel %vm316, %v314, %v315
          %v319 = vadd.f32 %v308, %v317
          %s320 = sld [smem:[#allocation6 + $0x1c]]
          %s321 = scalar_lea.vmem [#allocation4], 2
          %v322 = vld [vmem:[%s321] ss:$2 sm:$0x7]
          %v323 = vstv %s320
          %v324 = vmul.f32 %v323, %v322
          %326 = vrot.lane.b32.xlu0 %v324, 64
          %v327 = vpop.permute.xlu0 %326
          %v328 = vrot.slane %v327, 7
          %vm329 = vcmask 523264
          %v330 = vsel %vm329, %v328, %v327
          %v332 = vadd.f32 %v319, %v330
          %s333 = sld [smem:[#allocation6 + $0x23]]
          %v334 = vstv %s333
          %v335 = vmul.f32 %v334, %v322
          %337 = vrot.lane.b32.xlu0 %v335, 48
          %v338 = vpop.permute.xlu0 %337
          %v339 = vrot.slane %v338, 7
          %vm340 = vcmask 392192
          %v341 = vsel %vm340, %v339, %v338
          %v343 = vadd.f32 %v332, %v341
          %s344 = sld [smem:[#allocation6 + $0x2a]]
          %v345 = vstv %s344
          %v346 = vmul.f32 %v345, %v322
          %348 = vrot.lane.b32.xlu0 %v346, 32
          %v349 = vpop.permute.xlu0 %348
          %v350 = vrot.slane %v349, 7
          %vm351 = vcmask 261120
          %v352 = vsel %vm351, %v350, %v349
          %v354 = vadd.f32 %v343, %v352
          %s355 = sld [smem:[#allocation6 + $0x31]]
          %s356 = scalar_lea.vmem [#allocation4], 1
          %v357 = vld [vmem:[%s356] ss:$2 sm:$0x7]
          %v358 = vstv %s355
          %v359 = vmul.f32 %v358, %v357
          %v360 = vadd.f32 %v354, %v359
          %s361 = sld [smem:[#allocation6 + $0x38]]
          %v362 = vstv %s361
          %v363 = vmul.f32 %v362, %v357
          %365 = vrot.lane.b32.xlu0 %v363, 112
          %v366 = vpop.permute.xlu0 %365
          %v367 = vrot.slane %v366, 1
          %v368 = vsel %vm294, %v366, %v367
          %v370 = vadd.f32 %v360, %v368
          %s371 = sld [smem:[#allocation6 + $0x3f]]
          %v372 = vstv %s371
          %v373 = vmul.f32 %v372, %v357
          %375 = vrot.lane.b32.xlu0 %v373, 96
          %v376 = vpop.permute.xlu0 %375
          %v377 = vrot.slane %v376, 1
          %v378 = vsel %vm305, %v376, %v377
          %v380 = vadd.f32 %v370, %v378
          %s381 = sld [smem:[#allocation6 + $0x46]]
          %v382 = vstv %s381
          %v383 = vmul.f32 %v382, %v357
          %385 = vrot.lane.b32.xlu0 %v383, 80
          %v386 = vpop.permute.xlu0 %385
          %v387 = vrot.slane %v386, 1
          %v388 = vsel %vm316, %v386, %v387
          %v390 = vadd.f32 %v380, %v388
          %s391 = sld [smem:[#allocation6 + $0x4d]]
          %s392 = scalar_lea.vmem [#allocation4], 3
          %v393 = vld [vmem:[%s392] ss:$2 sm:$0x7]
          %v394 = vstv %s391
          %v395 = vmul.f32 %v394, %v393
          %397 = vrot.lane.b32.xlu0 %v395, 64
          %v398 = vpop.permute.xlu0 %397
          %v399 = vrot.slane %v398, 7
          %v400 = vsel %vm329, %v399, %v398
          %v402 = vadd.f32 %v390, %v400
          %s403 = sld [smem:[#allocation6 + $0x54]]
          %v404 = vstv %s403
          %v405 = vmul.f32 %v404, %v393
          %407 = vrot.lane.b32.xlu0 %v405, 48
          %v408 = vpop.permute.xlu0 %407
          %v409 = vrot.slane %v408, 7
          %v410 = vsel %vm340, %v409, %v408
          %v412 = vadd.f32 %v402, %v410
          %s413 = sld [smem:[#allocation6 + $0x5b]]
          %v414 = vstv %s413
          %v415 = vmul.f32 %v414, %v393
          %417 = vrot.lane.b32.xlu0 %v415, 32
          %v418 = vpop.permute.xlu0 %417
          %v419 = vrot.slane %v418, 7
          %v420 = vsel %vm351, %v419, %v418
          %v422 = vadd.f32 %v412, %v420
          %v424 = vperm.slane %v422, 0
          %v425 = vperm.slane %v422, 1
          %v426 = vperm.slane %v422, 2
          %427 = vrot.lane.b32.xlu0 %v424, 51
          %v428 = vpop.permute.xlu0 %427
          %429 = vrot.lane.b32.xlu0 %v425, 51
          %v430 = vpop.permute.xlu0 %429
          %431 = vrot.lane.b32.xlu0 %v426, 51
          %v432 = vpop.permute.xlu0 %431
          %vm433 = vcmask 416768
          %v434 = vsel %vm433, %v428, %v430
          %v435 = vsel %vm433, %v430, %v432
          %v438 = vsel %vm263, %v434, 0.0
          %v439 = vsel %vm264, %v435, 0.0
          %v440 = vadd.f32 %v438, 0.0
          %v441 = vadd.f32 %v439, 0.0
          %s442 = sld [smem:[#allocation6 + $0x1]]
          %v443 = vstv %s442
          %v444 = vmul.f32 %v443, %v283
          %v445 = vadd.f32 %v444, 0.0
          %s446 = sld [smem:[#allocation6 + $0x8]]
          %v447 = vstv %s446
          %v448 = vmul.f32 %v447, %v283
          %450 = vrot.lane.b32.xlu0 %v448, 112
          %v451 = vpop.permute.xlu0 %450
          %v452 = vrot.slane %v451, 1
          %v453 = vsel %vm294, %v451, %v452
          %v455 = vadd.f32 %v445, %v453
          %s456 = sld [smem:[#allocation6 + $0xf]]
          %v457 = vstv %s456
          %v458 = vmul.f32 %v457, %v283
          %460 = vrot.lane.b32.xlu0 %v458, 96
          %v461 = vpop.permute.xlu0 %460
          %v462 = vrot.slane %v461, 1
          %v463 = vsel %vm305, %v461, %v462
          %v465 = vadd.f32 %v455, %v463
          %s466 = sld [smem:[#allocation6 + $0x16]]
          %v467 = vstv %s466
          %v468 = vmul.f32 %v467, %v283
          %470 = vrot.lane.b32.xlu0 %v468, 80
          %v471 = vpop.permute.xlu0 %470
          %v472 = vrot.slane %v471, 1
          %v473 = vsel %vm316, %v471, %v472
          %v475 = vadd.f32 %v465, %v473
          %s476 = sld [smem:[#allocation6 + $0x1d]]
          %v477 = vstv %s476
          %v478 = vmul.f32 %v477, %v322
          %480 = vrot.lane.b32.xlu0 %v478, 64
          %v481 = vpop.permute.xlu0 %480
          %v482 = vrot.slane %v481, 7
          %v483 = vsel %vm329, %v482, %v481
          %v485 = vadd.f32 %v475, %v483
          %s486 = sld [smem:[#allocation6 + $0x24]]
          %v487 = vstv %s486
          %v488 = vmul.f32 %v487, %v322
          %490 = vrot.lane.b32.xlu0 %v488, 48
          %v491 = vpop.permute.xlu0 %490
          %v492 = vrot.slane %v491, 7
          %v493 = vsel %vm340, %v492, %v491
          %v495 = vadd.f32 %v485, %v493
          %s496 = sld [smem:[#allocation6 + $0x2b]]
          %v497 = vstv %s496
          %v498 = vmul.f32 %v497, %v322
          %500 = vrot.lane.b32.xlu0 %v498, 32
          %v501 = vpop.permute.xlu0 %500
          %v502 = vrot.slane %v501, 7
          %v503 = vsel %vm351, %v502, %v501
          %v505 = vadd.f32 %v495, %v503
          %s506 = sld [smem:[#allocation6 + $0x32]]
          %v507 = vstv %s506
          %v508 = vmul.f32 %v507, %v357
          %v509 = vadd.f32 %v505, %v508
          %s510 = sld [smem:[#allocation6 + $0x39]]
          %v511 = vstv %s510
          %v512 = vmul.f32 %v511, %v357
          %514 = vrot.lane.b32.xlu0 %v512, 112
          %v515 = vpop.permute.xlu0 %514
          %v516 = vrot.slane %v515, 1
          %v517 = vsel %vm294, %v515, %v516
          %v519 = vadd.f32 %v509, %v517
          %s520 = sld [smem:[#allocation6 + $0x40]]
          %v521 = vstv %s520
          %v522 = vmul.f32 %v521, %v357
          %524 = vrot.lane.b32.xlu0 %v522, 96
          %v525 = vpop.permute.xlu0 %524
          %v526 = vrot.slane %v525, 1
          %v527 = vsel %vm305, %v525, %v526
          %v529 = vadd.f32 %v519, %v527
          %s530 = sld [smem:[#allocation6 + $0x47]]
          %v531 = vstv %s530
          %v532 = vmul.f32 %v531, %v357
          %534 = vrot.lane.b32.xlu0 %v532, 80
          %v535 = vpop.permute.xlu0 %534
          %v536 = vrot.slane %v535, 1
          %v537 = vsel %vm316, %v535, %v536
          %v539 = vadd.f32 %v529, %v537
          %s540 = sld [smem:[#allocation6 + $0x4e]]
          %v541 = vstv %s540
          %v542 = vmul.f32 %v541, %v393
          %544 = vrot.lane.b32.xlu0 %v542, 64
          %v545 = vpop.permute.xlu0 %544
          %v546 = vrot.slane %v545, 7
          %v547 = vsel %vm329, %v546, %v545
          %v549 = vadd.f32 %v539, %v547
          %s550 = sld [smem:[#allocation6 + $0x55]]
          %v551 = vstv %s550
          %v552 = vmul.f32 %v551, %v393
          %554 = vrot.lane.b32.xlu0 %v552, 48
          %v555 = vpop.permute.xlu0 %554
          %v556 = vrot.slane %v555, 7
          %v557 = vsel %vm340, %v556, %v555
          %v559 = vadd.f32 %v549, %v557
          %s560 = sld [smem:[#allocation6 + $0x5c]]
          %v561 = vstv %s560
          %v562 = vmul.f32 %v561, %v393
          %564 = vrot.lane.b32.xlu0 %v562, 32
          %v565 = vpop.permute.xlu0 %564
          %v566 = vrot.slane %v565, 7
          %v567 = vsel %vm351, %v566, %v565
          %v569 = vadd.f32 %v559, %v567
          %v571 = vperm.slane %v569, 0
          %v572 = vperm.slane %v569, 1
          %v573 = vperm.slane %v569, 2
          %574 = vrot.lane.b32.xlu0 %v571, 50
          %v575 = vpop.permute.xlu0 %574
          %576 = vrot.lane.b32.xlu0 %v572, 50
          %v577 = vpop.permute.xlu0 %576
          %578 = vrot.lane.b32.xlu0 %v573, 50
          %v579 = vpop.permute.xlu0 %578
          %vm580 = vcmask 408576
          %v581 = vsel %vm580, %v575, %v577
          %v582 = vsel %vm580, %v577, %v579
          %v585 = vsel %vm265, %v581, 0.0
          %v586 = vsel %vm266, %v582, 0.0
          %v587 = vadd.f32 %v440, %v585
          %v588 = vadd.f32 %v441, %v586
          %s589 = sld [smem:[#allocation6 + $0x2]]
          %v590 = vstv %s589
          %v591 = vmul.f32 %v590, %v283
          %v592 = vadd.f32 %v591, 0.0
          %s593 = sld [smem:[#allocation6 + $0x9]]
          %v594 = vstv %s593
          %v595 = vmul.f32 %v594, %v283
          %597 = vrot.lane.b32.xlu0 %v595, 112
          %v598 = vpop.permute.xlu0 %597
          %v599 = vrot.slane %v598, 1
          %v600 = vsel %vm294, %v598, %v599
          %v602 = vadd.f32 %v592, %v600
          %s603 = sld [smem:[#allocation6 + $0x10]]
          %v604 = vstv %s603
          %v605 = vmul.f32 %v604, %v283
          %607 = vrot.lane.b32.xlu0 %v605, 96
          %v608 = vpop.permute.xlu0 %607
          %v609 = vrot.slane %v608, 1
          %v610 = vsel %vm305, %v608, %v609
          %v612 = vadd.f32 %v602, %v610
          %s613 = sld [smem:[#allocation6 + $0x17]]
          %v614 = vstv %s613
          %v615 = vmul.f32 %v614, %v283
          %617 = vrot.lane.b32.xlu0 %v615, 80
          %v618 = vpop.permute.xlu0 %617
          %v619 = vrot.slane %v618, 1
          %v620 = vsel %vm316, %v618, %v619
          %v622 = vadd.f32 %v612, %v620
          %s623 = sld [smem:[#allocation6 + $0x1e]]
          %v624 = vstv %s623
          %v625 = vmul.f32 %v624, %v322
          %627 = vrot.lane.b32.xlu0 %v625, 64
          %v628 = vpop.permute.xlu0 %627
          %v629 = vrot.slane %v628, 7
          %v630 = vsel %vm329, %v629, %v628
          %v632 = vadd.f32 %v622, %v630
          %s633 = sld [smem:[#allocation6 + $0x25]]
          %v634 = vstv %s633
          %v635 = vmul.f32 %v634, %v322
          %637 = vrot.lane.b32.xlu0 %v635, 48
          %v638 = vpop.permute.xlu0 %637
          %v639 = vrot.slane %v638, 7
          %v640 = vsel %vm340, %v639, %v638
          %v642 = vadd.f32 %v632, %v640
          %s643 = sld [smem:[#allocation6 + $0x2c]]
          %v644 = vstv %s643
          %v645 = vmul.f32 %v644, %v322
          %647 = vrot.lane.b32.xlu0 %v645, 32
          %v648 = vpop.permute.xlu0 %647
          %v649 = vrot.slane %v648, 7
          %v650 = vsel %vm351, %v649, %v648
          %v652 = vadd.f32 %v642, %v650
          %s653 = sld [smem:[#allocation6 + $0x33]]
          %v654 = vstv %s653
          %v655 = vmul.f32 %v654, %v357
          %v656 = vadd.f32 %v652, %v655
          %s657 = sld [smem:[#allocation6 + $0x3a]]
          %v658 = vstv %s657
          %v659 = vmul.f32 %v658, %v357
          %661 = vrot.lane.b32.xlu0 %v659, 112
          %v662 = vpop.permute.xlu0 %661
          %v663 = vrot.slane %v662, 1
          %v664 = vsel %vm294, %v662, %v663
          %v666 = vadd.f32 %v656, %v664
          %s667 = sld [smem:[#allocation6 + $0x41]]
          %v668 = vstv %s667
          %v669 = vmul.f32 %v668, %v357
          %671 = vrot.lane.b32.xlu0 %v669, 96
          %v672 = vpop.permute.xlu0 %671
          %v673 = vrot.slane %v672, 1
          %v674 = vsel %vm305, %v672, %v673
          %v676 = vadd.f32 %v666, %v674
          %s677 = sld [smem:[#allocation6 + $0x48]]
          %v678 = vstv %s677
          %v679 = vmul.f32 %v678, %v357
          %681 = vrot.lane.b32.xlu0 %v679, 80
          %v682 = vpop.permute.xlu0 %681
          %v683 = vrot.slane %v682, 1
          %v684 = vsel %vm316, %v682, %v683
          %v686 = vadd.f32 %v676, %v684
          %s687 = sld [smem:[#allocation6 + $0x4f]]
          %v688 = vstv %s687
          %v689 = vmul.f32 %v688, %v393
          %691 = vrot.lane.b32.xlu0 %v689, 64
          %v692 = vpop.permute.xlu0 %691
          %v693 = vrot.slane %v692, 7
          %v694 = vsel %vm329, %v693, %v692
          %v696 = vadd.f32 %v686, %v694
          %s697 = sld [smem:[#allocation6 + $0x56]]
          %v698 = vstv %s697
          %v699 = vmul.f32 %v698, %v393
          %701 = vrot.lane.b32.xlu0 %v699, 48
          %v702 = vpop.permute.xlu0 %701
          %v703 = vrot.slane %v702, 7
          %v704 = vsel %vm340, %v703, %v702
          %v706 = vadd.f32 %v696, %v704
          %s707 = sld [smem:[#allocation6 + $0x5d]]
          %v708 = vstv %s707
          %v709 = vmul.f32 %v708, %v393
          %711 = vrot.lane.b32.xlu0 %v709, 32
          %v712 = vpop.permute.xlu0 %711
          %v713 = vrot.slane %v712, 7
          %v714 = vsel %vm351, %v713, %v712
          %v716 = vadd.f32 %v706, %v714
          %v718 = vperm.slane %v716, 0
          %v719 = vperm.slane %v716, 1
          %v720 = vperm.slane %v716, 2
          %721 = vrot.lane.b32.xlu0 %v718, 49
          %v722 = vpop.permute.xlu0 %721
          %723 = vrot.lane.b32.xlu0 %v719, 49
          %v724 = vpop.permute.xlu0 %723
          %725 = vrot.lane.b32.xlu0 %v720, 49
          %v726 = vpop.permute.xlu0 %725
          %vm727 = vcmask 400384
          %v728 = vsel %vm727, %v722, %v724
          %v729 = vsel %vm727, %v724, %v726
          %v732 = vsel %vm267, %v728, 0.0
          %v733 = vsel %vm268, %v729, 0.0
          %v734 = vadd.f32 %v587, %v732
          %v735 = vadd.f32 %v588, %v733
          %s736 = sld [smem:[#allocation6 + $0x3]]
          %v737 = vstv %s736
          %v738 = vmul.f32 %v737, %v283
          %v739 = vadd.f32 %v738, 0.0
          %s740 = sld [smem:[#allocation6 + $0xa]]
          %v741 = vstv %s740
          %v742 = vmul.f32 %v741, %v283
          %744 = vrot.lane.b32.xlu0 %v742, 112
          %v745 = vpop.permute.xlu0 %744
          %v746 = vrot.slane %v745, 1
          %v747 = vsel %vm294, %v745, %v746
          %v749 = vadd.f32 %v739, %v747
          %s750 = sld [smem:[#allocation6 + $0x11]]
          %v751 = vstv %s750
          %v752 = vmul.f32 %v751, %v283
          %754 = vrot.lane.b32.xlu0 %v752, 96
          %v755 = vpop.permute.xlu0 %754
          %v756 = vrot.slane %v755, 1
          %v757 = vsel %vm305, %v755, %v756
          %v759 = vadd.f32 %v749, %v757
          %s760 = sld [smem:[#allocation6 + $0x18]]
          %v761 = vld [vmem:[%s277] ss:$2 sm:$0x3]
          %v762 = vstv %s760
          %v763 = vmul.f32 %v762, %v761
          %765 = vrot.lane.b32.xlu0 %v763, 80
          %v766 = vpop.permute.xlu0 %765
          %v767 = vrot.slane %v766, 7
          %v768 = vsel %vm316, %v767, %v766
          %v770 = vadd.f32 %v759, %v768
          %s771 = sld [smem:[#allocation6 + $0x1f]]
          %v772 = vstv %s771
          %v773 = vmul.f32 %v772, %v322
          %775 = vrot.lane.b32.xlu0 %v773, 64
          %v776 = vpop.permute.xlu0 %775
          %v777 = vrot.slane %v776, 7
          %v778 = vsel %vm329, %v777, %v776
          %v780 = vadd.f32 %v770, %v778
          %s781 = sld [smem:[#allocation6 + $0x26]]
          %v782 = vstv %s781
          %v783 = vmul.f32 %v782, %v322
          %785 = vrot.lane.b32.xlu0 %v783, 48
          %v786 = vpop.permute.xlu0 %785
          %v787 = vrot.slane %v786, 7
          %v788 = vsel %vm340, %v787, %v786
          %v790 = vadd.f32 %v780, %v788
          %s791 = sld [smem:[#allocation6 + $0x2d]]
          %v792 = vstv %s791
          %v793 = vmul.f32 %v792, %v322
          %795 = vrot.lane.b32.xlu0 %v793, 32
          %v796 = vpop.permute.xlu0 %795
          %v797 = vrot.slane %v796, 7
          %v798 = vsel %vm351, %v797, %v796
          %v800 = vadd.f32 %v790, %v798
          %s801 = sld [smem:[#allocation6 + $0x34]]
          %v802 = vstv %s801
          %v803 = vmul.f32 %v802, %v357
          %v804 = vadd.f32 %v800, %v803
          %s805 = sld [smem:[#allocation6 + $0x3b]]
          %v806 = vstv %s805
          %v807 = vmul.f32 %v806, %v357
          %809 = vrot.lane.b32.xlu0 %v807, 112
          %v810 = vpop.permute.xlu0 %809
          %v811 = vrot.slane %v810, 1
          %v812 = vsel %vm294, %v810, %v811
          %v814 = vadd.f32 %v804, %v812
          %s815 = sld [smem:[#allocation6 + $0x42]]
          %v816 = vstv %s815
          %v817 = vmul.f32 %v816, %v357
          %819 = vrot.lane.b32.xlu0 %v817, 96
          %v820 = vpop.permute.xlu0 %819
          %v821 = vrot.slane %v820, 1
          %v822 = vsel %vm305, %v820, %v821
          %v824 = vadd.f32 %v814, %v822
          %s825 = sld [smem:[#allocation6 + $0x49]]
          %v826 = vld [vmem:[%s280] ss:$2 sm:$0x3]
          %v827 = vstv %s825
          %v828 = vmul.f32 %v827, %v826
          %830 = vrot.lane.b32.xlu0 %v828, 80
          %v831 = vpop.permute.xlu0 %830
          %v832 = vrot.slane %v831, 7
          %v833 = vsel %vm316, %v832, %v831
          %v835 = vadd.f32 %v824, %v833
          %s836 = sld [smem:[#allocation6 + $0x50]]
          %v837 = vstv %s836
          %v838 = vmul.f32 %v837, %v393
          %840 = vrot.lane.b32.xlu0 %v838, 64
          %v841 = vpop.permute.xlu0 %840
          %v842 = vrot.slane %v841, 7
          %v843 = vsel %vm329, %v842, %v841
          %v845 = vadd.f32 %v835, %v843
          %s846 = sld [smem:[#allocation6 + $0x57]]
          %v847 = vstv %s846
          %v848 = vmul.f32 %v847, %v393
          %850 = vrot.lane.b32.xlu0 %v848, 48
          %v851 = vpop.permute.xlu0 %850
          %v852 = vrot.slane %v851, 7
          %v853 = vsel %vm340, %v852, %v851
          %v855 = vadd.f32 %v845, %v853
          %s856 = sld [smem:[#allocation6 + $0x5e]]
          %v857 = vstv %s856
          %v858 = vmul.f32 %v857, %v393
          %860 = vrot.lane.b32.xlu0 %v858, 32
          %v861 = vpop.permute.xlu0 %860
          %v862 = vrot.slane %v861, 7
          %v863 = vsel %vm351, %v862, %v861
          %v865 = vadd.f32 %v855, %v863
          %v867 = vperm.slane %v865, 0
          %v868 = vperm.slane %v865, 1
          %v869 = vperm.slane %v865, 2
          %870 = vrot.lane.b32.xlu0 %v867, 48
          %v871 = vpop.permute.xlu0 %870
          %872 = vrot.lane.b32.xlu0 %v868, 48
          %v873 = vpop.permute.xlu0 %872
          %874 = vrot.lane.b32.xlu0 %v869, 48
          %v875 = vpop.permute.xlu0 %874
          %v876 = vsel %vm340, %v871, %v873
          %v877 = vsel %vm340, %v873, %v875
          %v880 = vadd.f32 %v734, %v876
          %v881 = vadd.f32 %v735, %v877
          %s882 = sld [smem:[#allocation6 + $0x4]]
          %v883 = vstv %s882
          %v884 = vmul.f32 %v883, %v283
          %v885 = vadd.f32 %v884, 0.0
          %s886 = sld [smem:[#allocation6 + $0xb]]
          %v887 = vstv %s886
          %v888 = vmul.f32 %v887, %v283
          %890 = vrot.lane.b32.xlu0 %v888, 112
          %v891 = vpop.permute.xlu0 %890
          %v892 = vrot.slane %v891, 1
          %v893 = vsel %vm294, %v891, %v892
          %v895 = vadd.f32 %v885, %v893
          %s896 = sld [smem:[#allocation6 + $0x12]]
          %v897 = vstv %s896
          %v898 = vmul.f32 %v897, %v283
          %900 = vrot.lane.b32.xlu0 %v898, 96
          %v901 = vpop.permute.xlu0 %900
          %v902 = vrot.slane %v901, 1
          %v903 = vsel %vm305, %v901, %v902
          %v905 = vadd.f32 %v895, %v903
          %s906 = sld [smem:[#allocation6 + $0x19]]
          %v907 = vstv %s906
          %v908 = vmul.f32 %v907, %v322
          %910 = vrot.lane.b32.xlu0 %v908, 80
          %v911 = vpop.permute.xlu0 %910
          %v912 = vrot.slane %v911, 7
          %v913 = vsel %vm316, %v912, %v911
          %v915 = vadd.f32 %v905, %v913
          %s916 = sld [smem:[#allocation6 + $0x20]]
          %v917 = vstv %s916
          %v918 = vmul.f32 %v917, %v322
          %920 = vrot.lane.b32.xlu0 %v918, 64
          %v921 = vpop.permute.xlu0 %920
          %v922 = vrot.slane %v921, 7
          %v923 = vsel %vm329, %v922, %v921
          %v925 = vadd.f32 %v915, %v923
          %s926 = sld [smem:[#allocation6 + $0x27]]
          %v927 = vstv %s926
          %v928 = vmul.f32 %v927, %v322
          %930 = vrot.lane.b32.xlu0 %v928, 48
          %v931 = vpop.permute.xlu0 %930
          %v932 = vrot.slane %v931, 7
          %v933 = vsel %vm340, %v932, %v931
          %v935 = vadd.f32 %v925, %v933
          %s936 = sld [smem:[#allocation6 + $0x2e]]
          %v937 = vstv %s936
          %v938 = vmul.f32 %v937, %v322
          %940 = vrot.lane.b32.xlu0 %v938, 32
          %v941 = vpop.permute.xlu0 %940
          %v942 = vrot.slane %v941, 7
          %v943 = vsel %vm351, %v942, %v941
          %v945 = vadd.f32 %v935, %v943
          %s946 = sld [smem:[#allocation6 + $0x35]]
          %v947 = vstv %s946
          %v948 = vmul.f32 %v947, %v357
          %v949 = vadd.f32 %v945, %v948
          %s950 = sld [smem:[#allocation6 + $0x3c]]
          %v951 = vstv %s950
          %v952 = vmul.f32 %v951, %v357
          %954 = vrot.lane.b32.xlu0 %v952, 112
          %v955 = vpop.permute.xlu0 %954
          %v956 = vrot.slane %v955, 1
          %v957 = vsel %vm294, %v955, %v956
          %v959 = vadd.f32 %v949, %v957
          %s960 = sld [smem:[#allocation6 + $0x43]]
          %v961 = vstv %s960
          %v962 = vmul.f32 %v961, %v357
          %964 = vrot.lane.b32.xlu0 %v962, 96
          %v965 = vpop.permute.xlu0 %964
          %v966 = vrot.slane %v965, 1
          %v967 = vsel %vm305, %v965, %v966
          %v969 = vadd.f32 %v959, %v967
          %s970 = sld [smem:[#allocation6 + $0x4a]]
          %v971 = vstv %s970
          %v972 = vmul.f32 %v971, %v393
          %974 = vrot.lane.b32.xlu0 %v972, 80
          %v975 = vpop.permute.xlu0 %974
          %v976 = vrot.slane %v975, 7
          %v977 = vsel %vm316, %v976, %v975
          %v979 = vadd.f32 %v969, %v977
          %s980 = sld [smem:[#allocation6 + $0x51]]
          %v981 = vstv %s980
          %v982 = vmul.f32 %v981, %v393
          %984 = vrot.lane.b32.xlu0 %v982, 64
          %v985 = vpop.permute.xlu0 %984
          %v986 = vrot.slane %v985, 7
          %v987 = vsel %vm329, %v986, %v985
          %v989 = vadd.f32 %v979, %v987
          %s990 = sld [smem:[#allocation6 + $0x58]]
          %v991 = vstv %s990
          %v992 = vmul.f32 %v991, %v393
          %994 = vrot.lane.b32.xlu0 %v992, 48
          %v995 = vpop.permute.xlu0 %994
          %v996 = vrot.slane %v995, 7
          %v997 = vsel %vm340, %v996, %v995
          %v999 = vadd.f32 %v989, %v997
          %s1000 = sld [smem:[#allocation6 + $0x5f]]
          %v1001 = vstv %s1000
          %v1002 = vmul.f32 %v1001, %v393
          %1004 = vrot.lane.b32.xlu0 %v1002, 32
          %v1005 = vpop.permute.xlu0 %1004
          %v1006 = vrot.slane %v1005, 7
          %v1007 = vsel %vm351, %v1006, %v1005
          %v1009 = vadd.f32 %v999, %v1007
          %v1011 = vperm.slane %v1009, 0
          %v1012 = vperm.slane %v1009, 1
          %v1013 = vperm.slane %v1009, 2
          %1014 = vrot.lane.b32.xlu0 %v1011, 47
          %v1015 = vpop.permute.xlu0 %1014
          %1016 = vrot.lane.b32.xlu0 %v1012, 47
          %v1017 = vpop.permute.xlu0 %1016
          %1018 = vrot.lane.b32.xlu0 %v1013, 47
          %v1019 = vpop.permute.xlu0 %1018
          %vm1020 = vcmask 384000
          %v1021 = vsel %vm1020, %v1015, %v1017
          %v1022 = vsel %vm1020, %v1017, %v1019
          %v1025 = vsel %vm269, %v1021, 0.0
          %v1026 = vsel %vm270, %v1022, 0.0
          %v1027 = vadd.f32 %v880, %v1025
          %v1028 = vadd.f32 %v881, %v1026
          %s1029 = sld [smem:[#allocation6 + $0x5]]
          %v1030 = vstv %s1029
          %v1031 = vmul.f32 %v1030, %v283
          %v1032 = vadd.f32 %v1031, 0.0
          %s1033 = sld [smem:[#allocation6 + $0xc]]
          %v1034 = vstv %s1033
          %v1035 = vmul.f32 %v1034, %v283
          %1037 = vrot.lane.b32.xlu0 %v1035, 112
          %v1038 = vpop.permute.xlu0 %1037
          %v1039 = vrot.slane %v1038, 1
          %v1040 = vsel %vm294, %v1038, %v1039
          %v1042 = vadd.f32 %v1032, %v1040
          %s1043 = sld [smem:[#allocation6 + $0x13]]
          %v1044 = vstv %s1043
          %v1045 = vmul.f32 %v1044, %v283
          %1047 = vrot.lane.b32.xlu0 %v1045, 96
          %v1048 = vpop.permute.xlu0 %1047
          %v1049 = vrot.slane %v1048, 1
          %v1050 = vsel %vm305, %v1048, %v1049
          %v1052 = vadd.f32 %v1042, %v1050
          %s1053 = sld [smem:[#allocation6 + $0x1a]]
          %v1054 = vstv %s1053
          %v1055 = vmul.f32 %v1054, %v322
          %1057 = vrot.lane.b32.xlu0 %v1055, 80
          %v1058 = vpop.permute.xlu0 %1057
          %v1059 = vrot.slane %v1058, 7
          %v1060 = vsel %vm316, %v1059, %v1058
          %v1062 = vadd.f32 %v1052, %v1060
          %s1063 = sld [smem:[#allocation6 + $0x21]]
          %v1064 = vstv %s1063
          %v1065 = vmul.f32 %v1064, %v322
          %1067 = vrot.lane.b32.xlu0 %v1065, 64
          %v1068 = vpop.permute.xlu0 %1067
          %v1069 = vrot.slane %v1068, 7
          %v1070 = vsel %vm329, %v1069, %v1068
          %v1072 = vadd.f32 %v1062, %v1070
          %s1073 = sld [smem:[#allocation6 + $0x28]]
          %v1074 = vstv %s1073
          %v1075 = vmul.f32 %v1074, %v322
          %1077 = vrot.lane.b32.xlu0 %v1075, 48
          %v1078 = vpop.permute.xlu0 %1077
          %v1079 = vrot.slane %v1078, 7
          %v1080 = vsel %vm340, %v1079, %v1078
          %v1082 = vadd.f32 %v1072, %v1080
          %s1083 = sld [smem:[#allocation6 + $0x2f]]
          %v1084 = vstv %s1083
          %v1085 = vmul.f32 %v1084, %v322
          %1087 = vrot.lane.b32.xlu0 %v1085, 32
          %v1088 = vpop.permute.xlu0 %1087
          %v1089 = vrot.slane %v1088, 7
          %v1090 = vsel %vm351, %v1089, %v1088
          %v1092 = vadd.f32 %v1082, %v1090
          %s1093 = sld [smem:[#allocation6 + $0x36]]
          %v1094 = vstv %s1093
          %v1095 = vmul.f32 %v1094, %v357
          %v1096 = vadd.f32 %v1092, %v1095
          %s1097 = sld [smem:[#allocation6 + $0x3d]]
          %v1098 = vstv %s1097
          %v1099 = vmul.f32 %v1098, %v357
          %1101 = vrot.lane.b32.xlu0 %v1099, 112
          %v1102 = vpop.permute.xlu0 %1101
          %v1103 = vrot.slane %v1102, 1
          %v1104 = vsel %vm294, %v1102, %v1103
          %v1106 = vadd.f32 %v1096, %v1104
          %s1107 = sld [smem:[#allocation6 + $0x44]]
          %v1108 = vstv %s1107
          %v1109 = vmul.f32 %v1108, %v357
          %1111 = vrot.lane.b32.xlu0 %v1109, 96
          %v1112 = vpop.permute.xlu0 %1111
          %v1113 = vrot.slane %v1112, 1
          %v1114 = vsel %vm305, %v1112, %v1113
          %v1116 = vadd.f32 %v1106, %v1114
          %s1117 = sld [smem:[#allocation6 + $0x4b]]
          %v1118 = vstv %s1117
          %v1119 = vmul.f32 %v1118, %v393
          %1121 = vrot.lane.b32.xlu0 %v1119, 80
          %v1122 = vpop.permute.xlu0 %1121
          %v1123 = vrot.slane %v1122, 7
          %v1124 = vsel %vm316, %v1123, %v1122
          %v1126 = vadd.f32 %v1116, %v1124
          %s1127 = sld [smem:[#allocation6 + $0x52]]
          %v1128 = vstv %s1127
          %v1129 = vmul.f32 %v1128, %v393
          %1131 = vrot.lane.b32.xlu0 %v1129, 64
          %v1132 = vpop.permute.xlu0 %1131
          %v1133 = vrot.slane %v1132, 7
          %v1134 = vsel %vm329, %v1133, %v1132
          %v1136 = vadd.f32 %v1126, %v1134
          %s1137 = sld [smem:[#allocation6 + $0x59]]
          %v1138 = vstv %s1137
          %v1139 = vmul.f32 %v1138, %v393
          %1141 = vrot.lane.b32.xlu0 %v1139, 48
          %v1142 = vpop.permute.xlu0 %1141
          %v1143 = vrot.slane %v1142, 7
          %v1144 = vsel %vm340, %v1143, %v1142
          %v1146 = vadd.f32 %v1136, %v1144
          %s1147 = sld [smem:[#allocation6 + $0x60]]
          %v1148 = vstv %s1147
          %v1149 = vmul.f32 %v1148, %v393
          %1151 = vrot.lane.b32.xlu0 %v1149, 32
          %v1152 = vpop.permute.xlu0 %1151
          %v1153 = vrot.slane %v1152, 7
          %v1154 = vsel %vm351, %v1153, %v1152
          %v1156 = vadd.f32 %v1146, %v1154
          %v1158 = vperm.slane %v1156, 0
          %v1159 = vperm.slane %v1156, 1
          %v1160 = vperm.slane %v1156, 2
          %1161 = vrot.lane.b32.xlu0 %v1158, 46
          %v1162 = vpop.permute.xlu0 %1161
          %1163 = vrot.lane.b32.xlu0 %v1159, 46
          %v1164 = vpop.permute.xlu0 %1163
          %1165 = vrot.lane.b32.xlu0 %v1160, 46
          %v1166 = vpop.permute.xlu0 %1165
          %vm1167 = vcmask 375808
          %v1168 = vsel %vm1167, %v1162, %v1164
          %v1169 = vsel %vm1167, %v1164, %v1166
          %v1172 = vsel %vm271, %v1168, 0.0
          %v1173 = vsel %vm272, %v1169, 0.0
          %v1174 = vadd.f32 %v1027, %v1172
          %v1175 = vadd.f32 %v1028, %v1173
          %s1176 = sld [smem:[#allocation6 + $0x6]]
          %v1177 = vstv %s1176
          %v1178 = vmul.f32 %v1177, %v283
          %v1179 = vadd.f32 %v1178, 0.0
          %s1180 = sld [smem:[#allocation6 + $0xd]]
          %v1181 = vstv %s1180
          %v1182 = vmul.f32 %v1181, %v283
          %1184 = vrot.lane.b32.xlu0 %v1182, 112
          %v1185 = vpop.permute.xlu0 %1184
          %v1186 = vrot.slane %v1185, 1
          %v1187 = vsel %vm294, %v1185, %v1186
          %v1189 = vadd.f32 %v1179, %v1187
          %s1190 = sld [smem:[#allocation6 + $0x14]]
          %v1191 = vstv %s1190
          %v1192 = vmul.f32 %v1191, %v283
          %1194 = vrot.lane.b32.xlu0 %v1192, 96
          %v1195 = vpop.permute.xlu0 %1194
          %v1196 = vrot.slane %v1195, 1
          %v1197 = vsel %vm305, %v1195, %v1196
          %v1199 = vadd.f32 %v1189, %v1197
          %s1200 = sld [smem:[#allocation6 + $0x1b]]
          %v1201 = vstv %s1200
          %v1202 = vmul.f32 %v1201, %v322
          %1204 = vrot.lane.b32.xlu0 %v1202, 80
          %v1205 = vpop.permute.xlu0 %1204
          %v1206 = vrot.slane %v1205, 7
          %v1207 = vsel %vm316, %v1206, %v1205
          %v1209 = vadd.f32 %v1199, %v1207
          %s1210 = sld [smem:[#allocation6 + $0x22]]
          %v1211 = vstv %s1210
          %v1212 = vmul.f32 %v1211, %v322
          %1214 = vrot.lane.b32.xlu0 %v1212, 64
          %v1215 = vpop.permute.xlu0 %1214
          %v1216 = vrot.slane %v1215, 7
          %v1217 = vsel %vm329, %v1216, %v1215
          %v1219 = vadd.f32 %v1209, %v1217
          %s1220 = sld [smem:[#allocation6 + $0x29]]
          %v1221 = vstv %s1220
          %v1222 = vmul.f32 %v1221, %v322
          %1224 = vrot.lane.b32.xlu0 %v1222, 48
          %v1225 = vpop.permute.xlu0 %1224
          %v1226 = vrot.slane %v1225, 7
          %v1227 = vsel %vm340, %v1226, %v1225
          %v1229 = vadd.f32 %v1219, %v1227
          %s1230 = sld [smem:[#allocation6 + $0x30]]
          %v1231 = vstv %s1230
          %v1232 = vmul.f32 %v1231, %v322
          %1234 = vrot.lane.b32.xlu0 %v1232, 32
          %v1235 = vpop.permute.xlu0 %1234
          %v1236 = vrot.slane %v1235, 7
          %v1237 = vsel %vm351, %v1236, %v1235
          %v1239 = vadd.f32 %v1229, %v1237
          %s1240 = sld [smem:[#allocation6 + $0x37]]
          %v1241 = vstv %s1240
          %v1242 = vmul.f32 %v1241, %v357
          %v1243 = vadd.f32 %v1239, %v1242
          %s1244 = sld [smem:[#allocation6 + $0x3e]]
          %v1245 = vstv %s1244
          %v1246 = vmul.f32 %v1245, %v357
          %1248 = vrot.lane.b32.xlu0 %v1246, 112
          %v1249 = vpop.permute.xlu0 %1248
          %v1250 = vrot.slane %v1249, 1
          %v1251 = vsel %vm294, %v1249, %v1250
          %v1253 = vadd.f32 %v1243, %v1251
          %s1254 = sld [smem:[#allocation6 + $0x45]]
          %v1255 = vstv %s1254
          %v1256 = vmul.f32 %v1255, %v357
          %1258 = vrot.lane.b32.xlu0 %v1256, 96
          %v1259 = vpop.permute.xlu0 %1258
          %v1260 = vrot.slane %v1259, 1
          %v1261 = vsel %vm305, %v1259, %v1260
          %v1263 = vadd.f32 %v1253, %v1261
          %s1264 = sld [smem:[#allocation6 + $0x4c]]
          %v1265 = vstv %s1264
          %v1266 = vmul.f32 %v1265, %v393
          %1268 = vrot.lane.b32.xlu0 %v1266, 80
          %v1269 = vpop.permute.xlu0 %1268
          %v1270 = vrot.slane %v1269, 7
          %v1271 = vsel %vm316, %v1270, %v1269
          %v1273 = vadd.f32 %v1263, %v1271
          %s1274 = sld [smem:[#allocation6 + $0x53]]
          %v1275 = vstv %s1274
          %v1276 = vmul.f32 %v1275, %v393
          %1278 = vrot.lane.b32.xlu0 %v1276, 64
          %v1279 = vpop.permute.xlu0 %1278
          %v1280 = vrot.slane %v1279, 7
          %v1281 = vsel %vm329, %v1280, %v1279
          %v1283 = vadd.f32 %v1273, %v1281
          %s1284 = sld [smem:[#allocation6 + $0x5a]]
          %v1285 = vstv %s1284
          %v1286 = vmul.f32 %v1285, %v393
          %1288 = vrot.lane.b32.xlu0 %v1286, 48
          %v1289 = vpop.permute.xlu0 %1288
          %v1290 = vrot.slane %v1289, 7
          %v1291 = vsel %vm340, %v1290, %v1289
          %v1293 = vadd.f32 %v1283, %v1291
          %s1294 = sld [smem:[#allocation6 + $0x61]]
          %v1295 = vstv %s1294
          %v1296 = vmul.f32 %v1295, %v393
          %1298 = vrot.lane.b32.xlu0 %v1296, 32
          %v1299 = vpop.permute.xlu0 %1298
          %v1300 = vrot.slane %v1299, 7
          %v1301 = vsel %vm351, %v1300, %v1299
          %v1303 = vadd.f32 %v1293, %v1301
          %v1305 = vperm.slane %v1303, 0
          %v1306 = vperm.slane %v1303, 1
          %v1307 = vperm.slane %v1303, 2
          %1308 = vrot.lane.b32.xlu0 %v1305, 45
          %v1309 = vpop.permute.xlu0 %1308
          %1310 = vrot.lane.b32.xlu0 %v1306, 45
          %v1311 = vpop.permute.xlu0 %1310
          %1312 = vrot.lane.b32.xlu0 %v1307, 45
          %v1313 = vpop.permute.xlu0 %1312
          %vm1314 = vcmask 367616
          %v1315 = vsel %vm1314, %v1309, %v1311
          %v1316 = vsel %vm1314, %v1311, %v1313
          %v1319 = vsel %vm273, %v1315, 0.0
          %v1320 = vsel %vm274, %v1316, 0.0
          %v1321 = vadd.f32 %v1174, %v1319
          %v1322 = vadd.f32 %v1175, %v1320
          %v1323 = vxor.u32 %v1321, 2147483648
          %v1324 = vxor.u32 %v1322, 2147483648
          %v1325 = vmul.f32 %v1323, 1.442695
          %v1326 = vpow.pop %v1325
          %v1327 = vmul.f32 %v1324, 1.442695
          %v1328 = vpow.pop %v1327
          %v1329 = vadd.f32 %v1326, 1.0
          %v1330 = vadd.f32 %v1328, 1.0
          %v1331 = vrcp.pop %v1329
          %v1332 = vmul.f32 %v1329, %v1331
          %v1333 = vsub.f32 1.0, %v1332
          %v1334 = vmul.f32 %v1331, %v1333
          %v1335 = vadd.f32 %v1331, %v1334
          %vm1336 = vweird.f32 %v1329
          %vm1337 = vweird.f32 %v1331
          %vm1338 = vmor %vm1336, %vm1337
          %v1339 = vsel %vm1338, %v1331, %v1335
          %v1340 = vand.u32 2147483647, %v1329
          %vm1341 = vcmp.eq.f32.partialorder %v1340, 8.507059e+37
          %v1342 = vand.u32 %v1329, 2147483648
          %v1343 = vor.u32 1.1754944e-38, %v1342
          %v1344 = vsel %vm1341, %v1343, %v1339
          %v1345 = vmul.f32 1.0, %v1344
          %v1346 = vrcp.pop %v1330
          %v1347 = vmul.f32 %v1330, %v1346
          %v1348 = vsub.f32 1.0, %v1347
          %v1349 = vmul.f32 %v1346, %v1348
          %v1350 = vadd.f32 %v1346, %v1349
          %vm1351 = vweird.f32 %v1330
          %vm1352 = vweird.f32 %v1346
          %vm1353 = vmor %vm1351, %vm1352
          %v1354 = vsel %vm1353, %v1346, %v1350
          %v1355 = vand.u32 2147483647, %v1330
          %vm1356 = vcmp.eq.f32.partialorder %v1355, 8.507059e+37
          %v1357 = vand.u32 %v1330, 2147483648
          %v1358 = vor.u32 1.1754944e-38, %v1357
          %v1359 = vsel %vm1356, %v1358, %v1354
          %v1360 = vmul.f32 1.0, %v1359
          %v1363 = vrot.slane %v1360, 7
          %v1364 = vsel %vm196, %v1345, %v1363
          %1366 = vst.msk [vmem:[%s159] sm:$0x3] %vm203, %v1364
        $region36: #{tpu_custom_call.1} parent=23 // pred_fallthru
          _
        %s1367 = sand.u32 %s75, 1
        %s1368 = scalar_lea.sflag [#allocation9], %s1367
        %s1369 = sand.u32 %s75, 1
        %s1370 = smul.addr %s1369, 2
        %s1371 = scalar_lea.vmem [#allocation10], %s1370
        // Predicated region
        $region37: #{tpu_custom_call.1} parent=23 // pred_check
          %p1372 = pneg %p85
        $region38: #{tpu_custom_call.1} parent=23 // pred_check_branch
          %1374 = sbr.rel (%p1372) target = $region40
        $region39: #{tpu_custom_call.1} parent=23 // pred_region
          %1376 = vsyncadd %s1368, 0
          %s1377 = smul.addr %s31, 2
          %s1378 = scalar_lea.hbm %s2, %s1377
          %s1380 = sshll.u32 %s1371, 4
          %s1381 = int_to_ptr.vmem [resolvable:$true] %s1380
          %s1382 = sshll.u32 %s1378, 4
          %s1383 = int_to_ptr.hbm [resolvable:$true] %s1382
          %1385 = dma.vmem_to_hbm [thread:$0]  %s1381, 32, %s1383, %s1368
        $region40: #{tpu_custom_call.1} parent=23 // pred_fallthru
          _
      $region24: #{tpu_custom_call.1} parent=5 // pred_fallthru
        _
      %p1386 = scmp.le.s32.totalorder 2, %s22
      // Predicated region
      $region41: #{tpu_custom_call.1} parent=5 // pred_check
        %p1387 = pneg %p1386
      $region42: #{tpu_custom_call.1} parent=5 // pred_check_branch
        %1389 = sbr.rel (%p1387) target = $region44
      $region43: #{tpu_custom_call.1} parent=5 // pred_region
        %s1390 = ssub.s32 %s22, 2
        // Predicated region
        $region45: #{tpu_custom_call.1} parent=43 // pred_check
          %p1391 = pneg %p91
        $region46: #{tpu_custom_call.1} parent=43 // pred_check_branch
          %1393 = sbr.rel (%p1391) target = $region48
        $region47: #{tpu_custom_call.1} parent=43 // pred_region
          %s1394 = sand.u32 %s76, 1
          %s1395 = scalar_lea.sflag [#allocation9], %s1394
          %s1396 = sand.u32 %s76, 1
          %s1397 = smul.addr %s1396, 2
          %s1398 = scalar_lea.vmem [#allocation10], %s1397
          %1400 = dma.done %s1395, 32
        $region48: #{tpu_custom_call.1} parent=43 // pred_fallthru
          _
      $region44: #{tpu_custom_call.1} parent=5 // pred_fallthru
        _
    $region6: #{tpu_custom_call.1} parent=1 // loop_footer
      %s26 = sadd.s32 1, %s22
    $region7: #{tpu_custom_call.1} parent=1 // loop_footer_branch
      %21 = sbr.rel target = $region3
    $region8: #{tpu_custom_call.1} parent=1 // loop_exit
      _
    %1401 = vsyncpa [#allocation8], 1
    %s1402 = scalar_lea.sflag [#allocation8], 1
    %1403 = vsyncpa %s1402, 1
    %1404 = vsyncpa [#allocation9], 1
    %s1405 = scalar_lea.sflag [#allocation9], 1
    %1406 = vsyncpa %s1405, 1

</llo_original>
